<compile_context>
chip_gen: v5e
topology: v5e:2x2
jax: 0.10.0
libtpu: 0.0.40
codegen_flags: <defaults>
</compile_context>

<pallas_src>
import functools

import jax
import jax.numpy as jnp
from jax.experimental import pallas as pl
from jax.experimental.pallas import tpu as pltpu


_MIB = 1024 * 1024
_TILE_VMEM_BUDGET = 36 * _MIB   # working-set target used for tile selection
_VMEM_HARD_CAP = 56 * _MIB      # stay safely under v7x's 64 MiB physical VMEM


def _head_block(heads, dim_head, lane=128):
    """Heads processed per attention grid step: smallest divisor of `heads`
    whose packed width hb*dim_head reaches one vreg lane width (128)."""
    if dim_head >= lane:
        return 1
    want = -(-lane // dim_head)           # ceil(128 / dim_head)
    for hb in range(want, heads + 1):
        if heads % hb == 0:
            return hb
    return heads


def _tile_candidates(n, cap):
    """Multiples of 8 that divide n, descending, capped at `cap`; fallback [n]."""
    cands = [t for t in range(8, min(n, cap) + 1, 8) if n % t == 0]
    cands.sort(reverse=True)
    return cands if cands else [n]


def _attn_vmem_bytes(hb, tq, tk, dh, D, out_itemsize):
    """Approximate VMEM footprint of the flash-attention call
    (double-buffered input/output blocks + persistent scratch)."""
    q_blk = hb * tq * dh * 2
    kv_blk = hb * tk * dh * 2
    wo_blk = hb * dh * D * 2
    bias_blk = D * 4
    out_blk = tq * D * out_itemsize
    dbl = 2 * (q_blk + 2 * kv_blk + wo_blk + bias_blk + out_blk)
    scratch = 2 * hb * tq * 4 + hb * tq * dh * 4 + tq * D * 4
    return dbl + scratch


def _proj_vmem_bytes(hb, t, dh, D):
    x_blk = t * D * 2
    w_blk = 3 * hb * D * dh * 2
    o_blk = 3 * hb * t * dh * 2
    return 2 * (x_blk + w_blk + o_blk)


def _vmem_limit(estimate):
    """vmem_limit_bytes derived from actual buffer sizes (plus headroom),
    clamped to a v7x-safe ceiling."""
    return int(min(_VMEM_HARD_CAP, max(32 * _MIB, estimate * 3 // 2 + 2 * _MIB)))


# --------------------------------------------------------------------------
# Kernel 1: head-grouped QKV projection (softmax scale folded into q).
# Grid (B, seq_tiles, head_groups).
#   x_ref           : (1, t, D)        VMEM, bf16
#   wq/wk/wv_ref    : (hb, D, dh)      VMEM, bf16 (per-group weight slab)
#   q/k/v_ref       : (1, hb, t, dh)   VMEM, bf16 outputs
# --------------------------------------------------------------------------
def qkv_proj_kernel(x_ref, wq_ref, wk_ref, wv_ref, q_ref, k_ref, v_ref, *, hb, scale):
    xb = x_ref[0]                                                 # (t, D) bf16
    for j in range(hb):                                           # static unroll
        qj = jnp.dot(xb, wq_ref[j], preferred_element_type=jnp.float32)
        q_ref[0, j] = (qj * scale).astype(q_ref.dtype)            # scale folded into q
        k_ref[0, j] = jnp.dot(xb, wk_ref[j],
                              preferred_element_type=jnp.float32).astype(k_ref.dtype)
        v_ref[0, j] = jnp.dot(xb, wv_ref[j],
                              preferred_element_type=jnp.float32).astype(v_ref.dtype)


# --------------------------------------------------------------------------
# Kernel 2: head-grouped flash attention + fused output projection.
# Grid (B, q_tiles, head_groups, kv_tiles); kv innermost, groups next.
#   q_ref   : (1, hb, tq, dh) bf16 (pre-scaled)
#   k/v_ref : (1, hb, tk, dh) bf16
#   wo_ref  : (hb, dh, D) bf16      bo_ref : (1, D) f32
#   o_ref   : (1, tq, D)
#   scratch : m/l (hb,tq,1) f32, acc (hb,tq,dh) f32, y (tq,D) f32
# --------------------------------------------------------------------------
def flash_attn_kernel(q_ref, k_ref, v_ref, wo_ref, bo_ref, o_ref,
                      m_sc, l_sc, acc_sc, y_sc, *, hb):
    g = pl.program_id(2)
    ki = pl.program_id(3)
    ng = pl.num_programs(2)
    nk = pl.num_programs(3)

    @pl.when(jnp.logical_and(g == 0, ki == 0))
    def _():  # new (batch, q-tile): reset the fused output-projection accumulator
        y_sc[...] = jnp.zeros(y_sc.shape, dtype=y_sc.dtype)

    @pl.when(ki == 0)
    def _():  # new head group: reset online-softmax state
        m_sc[...] = jnp.full(m_sc.shape, -jnp.inf, dtype=m_sc.dtype)
        l_sc[...] = jnp.zeros(l_sc.shape, dtype=l_sc.dtype)
        acc_sc[...] = jnp.zeros(acc_sc.shape, dtype=acc_sc.dtype)

    qb = q_ref[0]                                                 # (hb, tq, dh) bf16
    kb = k_ref[0]                                                 # (hb, tk, dh) bf16
    vb = v_ref[0]                                                 # (hb, tk, dh) bf16

    # Batched per-head scores; contract last dims (no explicit transpose),
    # f32 MXU accumulation.  Scale was already folded into q by kernel 1.
    s = jnp.einsum('hqd,hkd->hqk', qb, kb, preferred_element_type=jnp.float32)

    m_prev = m_sc[...]
    m_new = jnp.maximum(m_prev, jnp.max(s, axis=-1, keepdims=True))
    alpha = jnp.exp(m_prev - m_new)
    p = jnp.exp(s - m_new)                                        # (hb, tq, tk) f32
    l_sc[...] = alpha * l_sc[...] + jnp.sum(p, axis=-1, keepdims=True)
    acc_sc[...] = alpha * acc_sc[...] + jnp.einsum(
        'hqk,hkd->hqd', p.astype(vb.dtype), vb, preferred_element_type=jnp.float32)
    m_sc[...] = m_new

    @pl.when(ki == nk - 1)
    def _():  # head group finished: normalize and fold into the output projection
        out_g = (acc_sc[...] * pl.reciprocal(l_sc[...], approx=True)).astype(jnp.bfloat16)
        y = y_sc[...]
        for j in range(hb):                                       # static unroll (epilogue only)
            y = y + jnp.dot(out_g[j], wo_ref[j], preferred_element_type=jnp.float32)
        y_sc[...] = y

    @pl.when(jnp.logical_and(g == ng - 1, ki == nk - 1))
    def _():  # all heads done for this q-tile: add bias once and store lane-dense (tq, D)
        o_ref[0] = (y_sc[...] + bo_ref[...]).astype(o_ref.dtype)


# --------------------------------------------------------------------------
# Wrapper
# --------------------------------------------------------------------------
def attention_forward(x, w_qkv, w_out, b_out, *, heads, dim_head,
                      tq_max=256, tk_max=512, proj_tile_max=256):
    """x: (B, N, D); w_qkv: (D, 3D); w_out: (D, D); b_out: (D,).
    Weights are stored (in_features, out_features): y = x @ W (== torch x @ W.T)."""
    B, N, D = x.shape
    assert D == heads * dim_head
    scale = float(dim_head) ** -0.5

    hb = _head_block(heads, dim_head)
    G = heads // hb

    # ---- tile selection under a VMEM budget (v7x-safe, same tiles on v5e/v6e) ----
    out_itemsize = jnp.dtype(x.dtype).itemsize
    tqs = _tile_candidates(N, tq_max)
    tks = _tile_candidates(N, tk_max)
    tq = tk = None
    for cand_tq in tqs:
        # keep >= 2 parallel work items so both v7x TensorCores stay busy
        if B * (N // cand_tq) < 2 and cand_tq != tqs[-1]:
            continue
        for cand_tk in tks:
            if _attn_vmem_bytes(hb, cand_tq, cand_tk, dim_head, D,
                                out_itemsize) <= _TILE_VMEM_BUDGET:
                tq, tk = cand_tq, cand_tk
                break
        if tq is not None:
            break
    if tq is None:
        tq, tk = tqs[-1], tks[-1]

    attn_est = _attn_vmem_bytes(hb, tq, tk, dim_head, D, out_itemsize)
    if attn_est > _VMEM_HARD_CAP:
        raise ValueError(
            f"attention tiles ({tq},{tk}) need ~{attn_est >> 20} MiB VMEM; "
            f"sequence length {N} has no usable multiple-of-8 divisor")

    t1 = _tile_candidates(N, proj_tile_max)[0]

    # ---- one-time layout plumbing + bf16 pre-cast at the XLA level ----
    wq, wk, wv = jnp.split(w_qkv, 3, axis=1)                      # (D, D) each

    def _per_head_in(w):                                          # (D, h*dh) -> (heads, D, dh)
        return jnp.transpose(w.reshape(D, heads, dim_head), (1, 0, 2)).astype(jnp.bfloat16)

    wq_h, wk_h, wv_h = _per_head_in(wq), _per_head_in(wk), _per_head_in(wv)
    wo_h = w_out.reshape(heads, dim_head, D).astype(jnp.bfloat16)  # rows indexed by (h, d)
    bo = b_out.reshape(1, D).astype(jnp.float32)                   # tiny + resident: keep f32
    x_bf = x.astype(jnp.bfloat16)

    # ---- kernel 1: head-grouped QKV projection -> (B, heads, N, dh) bf16 ----
    qkv_shape = jax.ShapeDtypeStruct((B, heads, N, dim_head), jnp.bfloat16)
    q, k, v = pl.pallas_call(
        functools.partial(qkv_proj_kernel, hb=hb, scale=scale),
        out_shape=(qkv_shape, qkv_shape, qkv_shape),
        grid_spec=pltpu.PrefetchScalarGridSpec(
            num_scalar_prefetch=0,
            grid=(B, N // t1, G),
            in_specs=[
                pl.BlockSpec((1, t1, D), lambda b, s, g: (b, s, 0)),
                pl.BlockSpec((hb, D, dim_head), lambda b, s, g: (g, 0, 0)),
                pl.BlockSpec((hb, D, dim_head), lambda b, s, g: (g, 0, 0)),
                pl.BlockSpec((hb, D, dim_head), lambda b, s, g: (g, 0, 0)),
            ],
            out_specs=[
                pl.BlockSpec((1, hb, t1, dim_head), lambda b, s, g: (b, g, s, 0)),
                pl.BlockSpec((1, hb, t1, dim_head), lambda b, s, g: (b, g, s, 0)),
                pl.BlockSpec((1, hb, t1, dim_head), lambda b, s, g: (b, g, s, 0)),
            ],
        ),
        compiler_params=pltpu.CompilerParams(
            dimension_semantics=("parallel", "parallel", "parallel"),
            vmem_limit_bytes=_vmem_limit(_proj_vmem_bytes(hb, t1, dim_head, D)),
        ),
    )(x_bf, wq_h, wk_h, wv_h)

    # ---- kernel 2: flash attention + fused per-head-group output projection ----
    out = pl.pallas_call(
        functools.partial(flash_attn_kernel, hb=hb),
        out_shape=jax.ShapeDtypeStruct((B, N, D), x.dtype),
        grid_spec=pltpu.PrefetchScalarGridSpec(
            num_scalar_prefetch=0,
            grid=(B, N // tq, G, N // tk),
            in_specs=[
                pl.BlockSpec((1, hb, tq, dim_head), lambda b, qi, g, ki: (b, g, qi, 0)),
                pl.BlockSpec((1, hb, tk, dim_head), lambda b, qi, g, ki: (b, g, ki, 0)),
                pl.BlockSpec((1, hb, tk, dim_head), lambda b, qi, g, ki: (b, g, ki, 0)),
                pl.BlockSpec((hb, dim_head, D), lambda b, qi, g, ki: (g, 0, 0)),
                pl.BlockSpec((1, D), lambda b, qi, g, ki: (0, 0)),
            ],
            out_specs=pl.BlockSpec((1, tq, D), lambda b, qi, g, ki: (b, qi, 0)),
            scratch_shapes=[
                pltpu.VMEM((hb, tq, 1), jnp.float32),           # running max m
                pltpu.VMEM((hb, tq, 1), jnp.float32),           # running sum l
                pltpu.VMEM((hb, tq, dim_head), jnp.float32),    # per-head PV accumulator
                pltpu.VMEM((tq, D), jnp.float32),               # output-projection accumulator
            ],
        ),
        compiler_params=pltpu.CompilerParams(
            dimension_semantics=("parallel", "parallel", "arbitrary", "arbitrary"),
            vmem_limit_bytes=_vmem_limit(attn_est),
        ),
    )(q, k, v, wo_h, bo)
    return out


def attention_reference(x, w_qkv, w_out, b_out, *, heads, dim_head):
    """Pure-JAX (f32) reference matching the PyTorch forward."""
    B, N, D = x.shape
    scale = float(dim_head) ** -0.5
    qkv = x @ w_qkv
    q, k, v = jnp.split(qkv, 3, axis=-1)

    def split_heads(t):  # 'b n (h d) -> b h n d'
        return t.reshape(B, N, heads, dim_head).transpose(0, 2, 1, 3)

    q, k, v = map(split_heads, (q, k, v))
    dots = jnp.einsum("bhnd,bhmd->bhnm", q, k) * scale
    attn = jax.nn.softmax(dots, axis=-1)
    out = jnp.einsum("bhnm,bhmd->bhnd", attn, v)
    out = out.transpose(0, 2, 1, 3).reshape(B, N, D)  # 'b h n d -> b n (h d)'
    return out @ w_out + b_out


if __name__ == "__main__":
    # Small shapes consistent with the module: dim == heads * dim_head.
    B, N = 2, 32
    heads, dim_head = 8, 32
    dim = heads * dim_head  # 256

    key = jax.random.PRNGKey(0)
    k1, k2, k3, k4 = jax.random.split(key, 4)

    x = jax.random.normal(k1, (B, N, dim), dtype=jnp.float32)
    # Parameters stored as (in, out) so the kernel computes x @ W
    w_qkv = jax.random.normal(k2, (dim, 3 * dim), dtype=jnp.float32) * 0.05
    w_out = jax.random.normal(k3, (dim, dim), dtype=jnp.float32) * 0.05
    b_out = jax.random.normal(k4, (dim,), dtype=jnp.float32) * 0.05

    # Small tile caps so the test exercises multi-step q/kv tiling, the online
    # softmax accumulation, and multi-head-group output accumulation.
    y = attention_forward(x, w_qkv, w_out, b_out, heads=heads, dim_head=dim_head,
                          tq_max=16, tk_max=8, proj_tile_max=16)
    y = jax.block_until_ready(y)

    y_ref = attention_reference(x, w_qkv, w_out, b_out, heads=heads, dim_head=dim_head)
    # bf16 matmul operands with f32 accumulation -> widened tolerance vs f32 reference
    assert jnp.allclose(y, y_ref, atol=3e-2, rtol=3e-2), "Pallas output mismatch vs reference"

    print("KERNEL_OK")
</pallas_src>

<mosaic_0001>
module attributes {stable_mosaic.version = 11 : i64} {
  func.func @qkv_proj_kernel(%arg0: i32, %arg1: i32, %arg2: i32, %arg3: memref<1x16x256xbf16, #tpu.memory_space<vmem>>, %arg4: memref<4x256x32xbf16, #tpu.memory_space<vmem>>, %arg5: memref<4x256x32xbf16, #tpu.memory_space<vmem>>, %arg6: memref<4x256x32xbf16, #tpu.memory_space<vmem>>, %arg7: memref<1x4x16x32xbf16, #tpu.memory_space<vmem>>, %arg8: memref<1x4x16x32xbf16, #tpu.memory_space<vmem>>, %arg9: memref<1x4x16x32xbf16, #tpu.memory_space<vmem>>) attributes {dimension_semantics = [#tpu.dimension_semantics<parallel>, #tpu.dimension_semantics<parallel>, #tpu.dimension_semantics<parallel>], iteration_bounds = array<i64: 2, 2, 2>, scalar_prefetch = 0 : i64, scratch_operands = 0 : i64, tpu.core_type = #tpu.core_type<tc>, window_params = [{transform_indices = @transform_0, window_bounds = array<i64: 1, 16, 256>}, {transform_indices = @transform_1, window_bounds = array<i64: 4, 256, 32>}, {transform_indices = @transform_2, window_bounds = array<i64: 4, 256, 32>}, {transform_indices = @transform_3, window_bounds = array<i64: 4, 256, 32>}, {transform_indices = @transform_4, window_bounds = array<i64: 1, 4, 16, 32>}, {transform_indices = @transform_5, window_bounds = array<i64: 1, 4, 16, 32>}, {transform_indices = @transform_6, window_bounds = array<i64: 1, 4, 16, 32>}]} {
    %c0 = arith.constant 0 : index
    %c0_0 = arith.constant 0 : index
    %c0_1 = arith.constant 0 : index
    %0 = vector.load %arg3[%c0, %c0_0, %c0_1] : memref<1x16x256xbf16, #tpu.memory_space<vmem>>, vector<1x16x256xbf16>
    %1 = vector.shape_cast %0 : vector<1x16x256xbf16> to vector<16x256xbf16>
    %c0_2 = arith.constant 0 : index
    %c0_3 = arith.constant 0 : index
    %c0_4 = arith.constant 0 : index
    %2 = vector.load %arg4[%c0_2, %c0_3, %c0_4] : memref<4x256x32xbf16, #tpu.memory_space<vmem>>, vector<1x256x32xbf16>
    %3 = vector.shape_cast %2 : vector<1x256x32xbf16> to vector<256x32xbf16>
    %cst = arith.constant dense<0.000000e+00> : vector<16x32xf32>
    %4 = tpu.matmul %1, %3, %cst {dimension_numbers = #tpu.dot_dimension_numbers<[1], [0], [0], [1], [0, 0, 1, 1], [], []>} : vector<16x256xbf16>, vector<256x32xbf16>, vector<16x32xf32> -> vector<16x32xf32>
    %cst_5 = arith.constant 0.176776692 : f32
    %5 = vector.broadcast %cst_5 : f32 to vector<16x32xf32>
    %6 = arith.mulf %4, %5 : vector<16x32xf32>
    %7 = arith.truncf %6 : vector<16x32xf32> to vector<16x32xbf16>
    %c0_6 = arith.constant 0 : index
    %c0_7 = arith.constant 0 : index
    %c0_8 = arith.constant 0 : index
    %c0_9 = arith.constant 0 : index
    %8 = vector.load %arg7[%c0_6, %c0_7, %c0_8, %c0_9] : memref<1x4x16x32xbf16, #tpu.memory_space<vmem>>, vector<1x1x16x32xbf16>
    %9 = vector.shape_cast %8 : vector<1x1x16x32xbf16> to vector<16x32xbf16>
    %10 = vector.shape_cast %7 : vector<16x32xbf16> to vector<1x1x16x32xbf16>
    tpu.vector_store %arg7[%c0_6, %c0_7, %c0_8, %c0_9], %10 {strides = array<i32>} : memref<1x4x16x32xbf16, #tpu.memory_space<vmem>>, vector<1x1x16x32xbf16>,
    %c0_10 = arith.constant 0 : index
    %c0_11 = arith.constant 0 : index
    %c0_12 = arith.constant 0 : index
    %11 = vector.load %arg5[%c0_10, %c0_11, %c0_12] : memref<4x256x32xbf16, #tpu.memory_space<vmem>>, vector<1x256x32xbf16>
    %12 = vector.shape_cast %11 : vector<1x256x32xbf16> to vector<256x32xbf16>
    %cst_13 = arith.constant dense<0.000000e+00> : vector<16x32xf32>
    %13 = tpu.matmul %1, %12, %cst_13 {dimension_numbers = #tpu.dot_dimension_numbers<[1], [0], [0], [1], [0, 0, 1, 1], [], []>} : vector<16x256xbf16>, vector<256x32xbf16>, vector<16x32xf32> -> vector<16x32xf32>
    %14 = arith.truncf %13 : vector<16x32xf32> to vector<16x32xbf16>
    %c0_14 = arith.constant 0 : index
    %c0_15 = arith.constant 0 : index
    %c0_16 = arith.constant 0 : index
    %c0_17 = arith.constant 0 : index
    %15 = vector.load %arg8[%c0_14, %c0_15, %c0_16, %c0_17] : memref<1x4x16x32xbf16, #tpu.memory_space<vmem>>, vector<1x1x16x32xbf16>
    %16 = vector.shape_cast %15 : vector<1x1x16x32xbf16> to vector<16x32xbf16>
    %17 = vector.shape_cast %14 : vector<16x32xbf16> to vector<1x1x16x32xbf16>
    tpu.vector_store %arg8[%c0_14, %c0_15, %c0_16, %c0_17], %17 {strides = array<i32>} : memref<1x4x16x32xbf16, #tpu.memory_space<vmem>>, vector<1x1x16x32xbf16>,
    %c0_18 = arith.constant 0 : index
    %c0_19 = arith.constant 0 : index
    %c0_20 = arith.constant 0 : index
    %18 = vector.load %arg6[%c0_18, %c0_19, %c0_20] : memref<4x256x32xbf16, #tpu.memory_space<vmem>>, vector<1x256x32xbf16>
    %19 = vector.shape_cast %18 : vector<1x256x32xbf16> to vector<256x32xbf16>
    %cst_21 = arith.constant dense<0.000000e+00> : vector<16x32xf32>
    %20 = tpu.matmul %1, %19, %cst_21 {dimension_numbers = #tpu.dot_dimension_numbers<[1], [0], [0], [1], [0, 0, 1, 1], [], []>} : vector<16x256xbf16>, vector<256x32xbf16>, vector<16x32xf32> -> vector<16x32xf32>
    %21 = arith.truncf %20 : vector<16x32xf32> to vector<16x32xbf16>
    %c0_22 = arith.constant 0 : index
    %c0_23 = arith.constant 0 : index
    %c0_24 = arith.constant 0 : index
    %c0_25 = arith.constant 0 : index
    %22 = vector.load %arg9[%c0_22, %c0_23, %c0_24, %c0_25] : memref<1x4x16x32xbf16, #tpu.memory_space<vmem>>, vector<1x1x16x32xbf16>
    %23 = vector.shape_cast %22 : vector<1x1x16x32xbf16> to vector<16x32xbf16>
    %24 = vector.shape_cast %21 : vector<16x32xbf16> to vector<1x1x16x32xbf16>
    tpu.vector_store %arg9[%c0_22, %c0_23, %c0_24, %c0_25], %24 {strides = array<i32>} : memref<1x4x16x32xbf16, #tpu.memory_space<vmem>>, vector<1x1x16x32xbf16>,
    %c1 = arith.constant 1 : index
    %c0_26 = arith.constant 0 : index
    %c0_27 = arith.constant 0 : index
    %25 = vector.load %arg4[%c1, %c0_26, %c0_27] : memref<4x256x32xbf16, #tpu.memory_space<vmem>>, vector<1x256x32xbf16>
    %26 = vector.shape_cast %25 : vector<1x256x32xbf16> to vector<256x32xbf16>
    %cst_28 = arith.constant dense<0.000000e+00> : vector<16x32xf32>
    %27 = tpu.matmul %1, %26, %cst_28 {dimension_numbers = #tpu.dot_dimension_numbers<[1], [0], [0], [1], [0, 0, 1, 1], [], []>} : vector<16x256xbf16>, vector<256x32xbf16>, vector<16x32xf32> -> vector<16x32xf32>
    %cst_29 = arith.constant 0.176776692 : f32
    %28 = vector.broadcast %cst_29 : f32 to vector<16x32xf32>
    %29 = arith.mulf %27, %28 : vector<16x32xf32>
    %30 = arith.truncf %29 : vector<16x32xf32> to vector<16x32xbf16>
    %c0_30 = arith.constant 0 : index
    %c1_31 = arith.constant 1 : index
    %c0_32 = arith.constant 0 : index
    %c0_33 = arith.constant 0 : index
    %31 = vector.load %arg7[%c0_30, %c1_31, %c0_32, %c0_33] : memref<1x4x16x32xbf16, #tpu.memory_space<vmem>>, vector<1x1x16x32xbf16>
    %32 = vector.shape_cast %31 : vector<1x1x16x32xbf16> to vector<16x32xbf16>
    %33 = vector.shape_cast %30 : vector<16x32xbf16> to vector<1x1x16x32xbf16>
    tpu.vector_store %arg7[%c0_30, %c1_31, %c0_32, %c0_33], %33 {strides = array<i32>} : memref<1x4x16x32xbf16, #tpu.memory_space<vmem>>, vector<1x1x16x32xbf16>,
    %c1_34 = arith.constant 1 : index
    %c0_35 = arith.constant 0 : index
    %c0_36 = arith.constant 0 : index
    %34 = vector.load %arg5[%c1_34, %c0_35, %c0_36] : memref<4x256x32xbf16, #tpu.memory_space<vmem>>, vector<1x256x32xbf16>
    %35 = vector.shape_cast %34 : vector<1x256x32xbf16> to vector<256x32xbf16>
    %cst_37 = arith.constant dense<0.000000e+00> : vector<16x32xf32>
    %36 = tpu.matmul %1, %35, %cst_37 {dimension_numbers = #tpu.dot_dimension_numbers<[1], [0], [0], [1], [0, 0, 1, 1], [], []>} : vector<16x256xbf16>, vector<256x32xbf16>, vector<16x32xf32> -> vector<16x32xf32>
    %37 = arith.truncf %36 : vector<16x32xf32> to vector<16x32xbf16>
    %c0_38 = arith.constant 0 : index
    %c1_39 = arith.constant 1 : index
    %c0_40 = arith.constant 0 : index
    %c0_41 = arith.constant 0 : index
    %38 = vector.load %arg8[%c0_38, %c1_39, %c0_40, %c0_41] : memref<1x4x16x32xbf16, #tpu.memory_space<vmem>>, vector<1x1x16x32xbf16>
    %39 = vector.shape_cast %38 : vector<1x1x16x32xbf16> to vector<16x32xbf16>
    %40 = vector.shape_cast %37 : vector<16x32xbf16> to vector<1x1x16x32xbf16>
    tpu.vector_store %arg8[%c0_38, %c1_39, %c0_40, %c0_41], %40 {strides = array<i32>} : memref<1x4x16x32xbf16, #tpu.memory_space<vmem>>, vector<1x1x16x32xbf16>,
    %c1_42 = arith.constant 1 : index
    %c0_43 = arith.constant 0 : index
    %c0_44 = arith.constant 0 : index
    %41 = vector.load %arg6[%c1_42, %c0_43, %c0_44] : memref<4x256x32xbf16, #tpu.memory_space<vmem>>, vector<1x256x32xbf16>
    %42 = vector.shape_cast %41 : vector<1x256x32xbf16> to vector<256x32xbf16>
    %cst_45 = arith.constant dense<0.000000e+00> : vector<16x32xf32>
    %43 = tpu.matmul %1, %42, %cst_45 {dimension_numbers = #tpu.dot_dimension_numbers<[1], [0], [0], [1], [0, 0, 1, 1], [], []>} : vector<16x256xbf16>, vector<256x32xbf16>, vector<16x32xf32> -> vector<16x32xf32>
    %44 = arith.truncf %43 : vector<16x32xf32> to vector<16x32xbf16>
    %c0_46 = arith.constant 0 : index
    %c1_47 = arith.constant 1 : index
    %c0_48 = arith.constant 0 : index
    %c0_49 = arith.constant 0 : index
    %45 = vector.load %arg9[%c0_46, %c1_47, %c0_48, %c0_49] : memref<1x4x16x32xbf16, #tpu.memory_space<vmem>>, vector<1x1x16x32xbf16>
    %46 = vector.shape_cast %45 : vector<1x1x16x32xbf16> to vector<16x32xbf16>
    %47 = vector.shape_cast %44 : vector<16x32xbf16> to vector<1x1x16x32xbf16>
    tpu.vector_store %arg9[%c0_46, %c1_47, %c0_48, %c0_49], %47 {strides = array<i32>} : memref<1x4x16x32xbf16, #tpu.memory_space<vmem>>, vector<1x1x16x32xbf16>,
    %c2 = arith.constant 2 : index
    %c0_50 = arith.constant 0 : index
    %c0_51 = arith.constant 0 : index
    %48 = vector.load %arg4[%c2, %c0_50, %c0_51] : memref<4x256x32xbf16, #tpu.memory_space<vmem>>, vector<1x256x32xbf16>
    %49 = vector.shape_cast %48 : vector<1x256x32xbf16> to vector<256x32xbf16>
    %cst_52 = arith.constant dense<0.000000e+00> : vector<16x32xf32>
    %50 = tpu.matmul %1, %49, %cst_52 {dimension_numbers = #tpu.dot_dimension_numbers<[1], [0], [0], [1], [0, 0, 1, 1], [], []>} : vector<16x256xbf16>, vector<256x32xbf16>, vector<16x32xf32> -> vector<16x32xf32>
    %cst_53 = arith.constant 0.176776692 : f32
    %51 = vector.broadcast %cst_53 : f32 to vector<16x32xf32>
    %52 = arith.mulf %50, %51 : vector<16x32xf32>
    %53 = arith.truncf %52 : vector<16x32xf32> to vector<16x32xbf16>
    %c0_54 = arith.constant 0 : index
    %c2_55 = arith.constant 2 : index
    %c0_56 = arith.constant 0 : index
    %c0_57 = arith.constant 0 : index
    %54 = vector.load %arg7[%c0_54, %c2_55, %c0_56, %c0_57] : memref<1x4x16x32xbf16, #tpu.memory_space<vmem>>, vector<1x1x16x32xbf16>
    %55 = vector.shape_cast %54 : vector<1x1x16x32xbf16> to vector<16x32xbf16>
    %56 = vector.shape_cast %53 : vector<16x32xbf16> to vector<1x1x16x32xbf16>
    tpu.vector_store %arg7[%c0_54, %c2_55, %c0_56, %c0_57], %56 {strides = array<i32>} : memref<1x4x16x32xbf16, #tpu.memory_space<vmem>>, vector<1x1x16x32xbf16>,
    %c2_58 = arith.constant 2 : index
    %c0_59 = arith.constant 0 : index
    %c0_60 = arith.constant 0 : index
    %57 = vector.load %arg5[%c2_58, %c0_59, %c0_60] : memref<4x256x32xbf16, #tpu.memory_space<vmem>>, vector<1x256x32xbf16>
    %58 = vector.shape_cast %57 : vector<1x256x32xbf16> to vector<256x32xbf16>
    %cst_61 = arith.constant dense<0.000000e+00> : vector<16x32xf32>
    %59 = tpu.matmul %1, %58, %cst_61 {dimension_numbers = #tpu.dot_dimension_numbers<[1], [0], [0], [1], [0, 0, 1, 1], [], []>} : vector<16x256xbf16>, vector<256x32xbf16>, vector<16x32xf32> -> vector<16x32xf32>
    %60 = arith.truncf %59 : vector<16x32xf32> to vector<16x32xbf16>
    %c0_62 = arith.constant 0 : index
    %c2_63 = arith.constant 2 : index
    %c0_64 = arith.constant 0 : index
    %c0_65 = arith.constant 0 : index
    %61 = vector.load %arg8[%c0_62, %c2_63, %c0_64, %c0_65] : memref<1x4x16x32xbf16, #tpu.memory_space<vmem>>, vector<1x1x16x32xbf16>
    %62 = vector.shape_cast %61 : vector<1x1x16x32xbf16> to vector<16x32xbf16>
    %63 = vector.shape_cast %60 : vector<16x32xbf16> to vector<1x1x16x32xbf16>
    tpu.vector_store %arg8[%c0_62, %c2_63, %c0_64, %c0_65], %63 {strides = array<i32>} : memref<1x4x16x32xbf16, #tpu.memory_space<vmem>>, vector<1x1x16x32xbf16>,
    %c2_66 = arith.constant 2 : index
    %c0_67 = arith.constant 0 : index
    %c0_68 = arith.constant 0 : index
    %64 = vector.load %arg6[%c2_66, %c0_67, %c0_68] : memref<4x256x32xbf16, #tpu.memory_space<vmem>>, vector<1x256x32xbf16>
    %65 = vector.shape_cast %64 : vector<1x256x32xbf16> to vector<256x32xbf16>
    %cst_69 = arith.constant dense<0.000000e+00> : vector<16x32xf32>
    %66 = tpu.matmul %1, %65, %cst_69 {dimension_numbers = #tpu.dot_dimension_numbers<[1], [0], [0], [1], [0, 0, 1, 1], [], []>} : vector<16x256xbf16>, vector<256x32xbf16>, vector<16x32xf32> -> vector<16x32xf32>
    %67 = arith.truncf %66 : vector<16x32xf32> to vector<16x32xbf16>
    %c0_70 = arith.constant 0 : index
    %c2_71 = arith.constant 2 : index
    %c0_72 = arith.constant 0 : index
    %c0_73 = arith.constant 0 : index
    %68 = vector.load %arg9[%c0_70, %c2_71, %c0_72, %c0_73] : memref<1x4x16x32xbf16, #tpu.memory_space<vmem>>, vector<1x1x16x32xbf16>
    %69 = vector.shape_cast %68 : vector<1x1x16x32xbf16> to vector<16x32xbf16>
    %70 = vector.shape_cast %67 : vector<16x32xbf16> to vector<1x1x16x32xbf16>
    tpu.vector_store %arg9[%c0_70, %c2_71, %c0_72, %c0_73], %70 {strides = array<i32>} : memref<1x4x16x32xbf16, #tpu.memory_space<vmem>>, vector<1x1x16x32xbf16>,
    %c3 = arith.constant 3 : index
    %c0_74 = arith.constant 0 : index
    %c0_75 = arith.constant 0 : index
    %71 = vector.load %arg4[%c3, %c0_74, %c0_75] : memref<4x256x32xbf16, #tpu.memory_space<vmem>>, vector<1x256x32xbf16>
    %72 = vector.shape_cast %71 : vector<1x256x32xbf16> to vector<256x32xbf16>
    %cst_76 = arith.constant dense<0.000000e+00> : vector<16x32xf32>
    %73 = tpu.matmul %1, %72, %cst_76 {dimension_numbers = #tpu.dot_dimension_numbers<[1], [0], [0], [1], [0, 0, 1, 1], [], []>} : vector<16x256xbf16>, vector<256x32xbf16>, vector<16x32xf32> -> vector<16x32xf32>
    %cst_77 = arith.constant 0.176776692 : f32
    %74 = vector.broadcast %cst_77 : f32 to vector<16x32xf32>
    %75 = arith.mulf %73, %74 : vector<16x32xf32>
    %76 = arith.truncf %75 : vector<16x32xf32> to vector<16x32xbf16>
    %c0_78 = arith.constant 0 : index
    %c3_79 = arith.constant 3 : index
    %c0_80 = arith.constant 0 : index
    %c0_81 = arith.constant 0 : index
    %77 = vector.load %arg7[%c0_78, %c3_79, %c0_80, %c0_81] : memref<1x4x16x32xbf16, #tpu.memory_space<vmem>>, vector<1x1x16x32xbf16>
    %78 = vector.shape_cast %77 : vector<1x1x16x32xbf16> to vector<16x32xbf16>
    %79 = vector.shape_cast %76 : vector<16x32xbf16> to vector<1x1x16x32xbf16>
    tpu.vector_store %arg7[%c0_78, %c3_79, %c0_80, %c0_81], %79 {strides = array<i32>} : memref<1x4x16x32xbf16, #tpu.memory_space<vmem>>, vector<1x1x16x32xbf16>,
    %c3_82 = arith.constant 3 : index
    %c0_83 = arith.constant 0 : index
    %c0_84 = arith.constant 0 : index
    %80 = vector.load %arg5[%c3_82, %c0_83, %c0_84] : memref<4x256x32xbf16, #tpu.memory_space<vmem>>, vector<1x256x32xbf16>
    %81 = vector.shape_cast %80 : vector<1x256x32xbf16> to vector<256x32xbf16>
    %cst_85 = arith.constant dense<0.000000e+00> : vector<16x32xf32>
    %82 = tpu.matmul %1, %81, %cst_85 {dimension_numbers = #tpu.dot_dimension_numbers<[1], [0], [0], [1], [0, 0, 1, 1], [], []>} : vector<16x256xbf16>, vector<256x32xbf16>, vector<16x32xf32> -> vector<16x32xf32>
    %83 = arith.truncf %82 : vector<16x32xf32> to vector<16x32xbf16>
    %c0_86 = arith.constant 0 : index
    %c3_87 = arith.constant 3 : index
    %c0_88 = arith.constant 0 : index
    %c0_89 = arith.constant 0 : index
    %84 = vector.load %arg8[%c0_86, %c3_87, %c0_88, %c0_89] : memref<1x4x16x32xbf16, #tpu.memory_space<vmem>>, vector<1x1x16x32xbf16>
    %85 = vector.shape_cast %84 : vector<1x1x16x32xbf16> to vector<16x32xbf16>
    %86 = vector.shape_cast %83 : vector<16x32xbf16> to vector<1x1x16x32xbf16>
    tpu.vector_store %arg8[%c0_86, %c3_87, %c0_88, %c0_89], %86 {strides = array<i32>} : memref<1x4x16x32xbf16, #tpu.memory_space<vmem>>, vector<1x1x16x32xbf16>,
    %c3_90 = arith.constant 3 : index
    %c0_91 = arith.constant 0 : index
    %c0_92 = arith.constant 0 : index
    %87 = vector.load %arg6[%c3_90, %c0_91, %c0_92] : memref<4x256x32xbf16, #tpu.memory_space<vmem>>, vector<1x256x32xbf16>
    %88 = vector.shape_cast %87 : vector<1x256x32xbf16> to vector<256x32xbf16>
    %cst_93 = arith.constant dense<0.000000e+00> : vector<16x32xf32>
    %89 = tpu.matmul %1, %88, %cst_93 {dimension_numbers = #tpu.dot_dimension_numbers<[1], [0], [0], [1], [0, 0, 1, 1], [], []>} : vector<16x256xbf16>, vector<256x32xbf16>, vector<16x32xf32> -> vector<16x32xf32>
    %90 = arith.truncf %89 : vector<16x32xf32> to vector<16x32xbf16>
    %c0_94 = arith.constant 0 : index
    %c3_95 = arith.constant 3 : index
    %c0_96 = arith.constant 0 : index
    %c0_97 = arith.constant 0 : index
    %91 = vector.load %arg9[%c0_94, %c3_95, %c0_96, %c0_97] : memref<1x4x16x32xbf16, #tpu.memory_space<vmem>>, vector<1x1x16x32xbf16>
    %92 = vector.shape_cast %91 : vector<1x1x16x32xbf16> to vector<16x32xbf16>
    %93 = vector.shape_cast %90 : vector<16x32xbf16> to vector<1x1x16x32xbf16>
    tpu.vector_store %arg9[%c0_94, %c3_95, %c0_96, %c0_97], %93 {strides = array<i32>} : memref<1x4x16x32xbf16, #tpu.memory_space<vmem>>, vector<1x1x16x32xbf16>,
    return
  }
  func.func @transform_0(%arg0: i32, %arg1: i32, %arg2: i32) -> (i32, i32, i32) {
    %c0_i32 = arith.constant 0 : i32
    %c0_i32_0 = arith.constant 0 : i32
    return %arg0, %arg1, %c0_i32 : i32, i32, i32
  }
  func.func @transform_1(%arg0: i32, %arg1: i32, %arg2: i32) -> (i32, i32, i32) {
    %c0_i32 = arith.constant 0 : i32
    %c0_i32_0 = arith.constant 0 : i32
    %c0_i32_1 = arith.constant 0 : i32
    return %arg2, %c0_i32, %c0_i32_0 : i32, i32, i32
  }
  func.func @transform_2(%arg0: i32, %arg1: i32, %arg2: i32) -> (i32, i32, i32) {
    %c0_i32 = arith.constant 0 : i32
    %c0_i32_0 = arith.constant 0 : i32
    %c0_i32_1 = arith.constant 0 : i32
    return %arg2, %c0_i32, %c0_i32_0 : i32, i32, i32
  }
  func.func @transform_3(%arg0: i32, %arg1: i32, %arg2: i32) -> (i32, i32, i32) {
    %c0_i32 = arith.constant 0 : i32
    %c0_i32_0 = arith.constant 0 : i32
    %c0_i32_1 = arith.constant 0 : i32
    return %arg2, %c0_i32, %c0_i32_0 : i32, i32, i32
  }
  func.func @transform_4(%arg0: i32, %arg1: i32, %arg2: i32) -> (i32, i32, i32, i32) {
    %c0_i32 = arith.constant 0 : i32
    %c0_i32_0 = arith.constant 0 : i32
    return %arg0, %arg2, %arg1, %c0_i32 : i32, i32, i32, i32
  }
  func.func @transform_5(%arg0: i32, %arg1: i32, %arg2: i32) -> (i32, i32, i32, i32) {
    %c0_i32 = arith.constant 0 : i32
    %c0_i32_0 = arith.constant 0 : i32
    return %arg0, %arg2, %arg1, %c0_i32 : i32, i32, i32, i32
  }
  func.func @transform_6(%arg0: i32, %arg1: i32, %arg2: i32) -> (i32, i32, i32, i32) {
    %c0_i32 = arith.constant 0 : i32
    %c0_i32_0 = arith.constant 0 : i32
    return %arg0, %arg2, %arg1, %c0_i32 : i32, i32, i32, i32
  }
}

</mosaic_0001>

<llo_original>
// kernel: tpu_custom_call.1
$region0: #{tpu_custom_call.1}
  #allocation0 [shape = 'u32[]', space=smem, size = 0x4, offset = 0x4, fixed_abs, tag = 'smem constant byte address 0x4 - core index']
  #allocation1 [shape = 'u32[72,128]{1,0:T(1,128)}', space=vmem, size = 0x9000, scoped, tag = 'internal scratch']
  #allocation7 [shape = 's32[]', space=sflag, size = 0x4, offset = 0, fixed_abs, tag = 'sflag constant byte address 0x0 - dummy sync flag']
  #allocation9 [shape = 's32[]', space=sflag, size = 0x4, offset = 0, fixed_abs, tag = 'sflag constant byte address 0x0 - dummy sync flag']
  #allocation11 [shape = 's32[]', space=sflag, size = 0x4, offset = 0, fixed_abs, tag = 'sflag constant byte address 0x0 - dummy sync flag']
  %s0 = inlined_call_operand.vmem [shape: bf16[2,32,256], index: 0, kind: input, shape index: {}]
  %s1 = inlined_call_operand.vmem [shape: bf16[8,256,32], index: 1, kind: input, shape index: {}]
  %s2 = inlined_call_operand.vmem [shape: bf16[8,256,32], index: 2, kind: input, shape index: {}]
  %s3 = inlined_call_operand.vmem [shape: bf16[8,256,32], index: 3, kind: input, shape index: {}]
  %s4 = inlined_call_operand.hbm [shape: bf16[2,8,32,32], index: 4, kind: output, shape index: {0}]
  %s5 = inlined_call_operand.hbm [shape: bf16[2,8,32,32], index: 5, kind: output, shape index: {1}]
  %s6 = inlined_call_operand.hbm [shape: bf16[2,8,32,32], index: 6, kind: output, shape index: {2}]
  %7 = xla_tuple %s4, %s5, %s6
  %s8 = sld [smem:[#allocation0]]
  $region65: #{tpu_custom_call.1} parent=0
    _
  %s10 = ssub.s32 1, %s8
  %s11 = scalar_select 0, %s10, %s8
  $region1: #{tpu_custom_call.1} parent=0
    #allocation2 [shape = 'u8[32768]{0}', space=vmem, size = 0x8000, scoped, tag = 'output window, operand 0']
    #allocation3 [shape = 's32[2]{0}', space=sflag, size = 0x8, scoped, tag = 'scoped memory for tpu_custom_call.1']
    #allocation4 [shape = 'u8[32768]{0}', space=vmem, size = 0x8000, scoped, tag = 'output window, operand 1']
    #allocation5 [shape = 's32[2]{0}', space=sflag, size = 0x8, scoped, tag = 'scoped memory for tpu_custom_call.1']
    #allocation6 [shape = 'u8[32768]{0}', space=vmem, size = 0x8000, scoped, tag = 'output window, operand 2']
    %12 = vsyncpa [#allocation3], 0
    %s13 = scalar_lea.sflag [#allocation3], 1
    %14 = vsyncpa %s13, 0
    %15 = vsyncpa [#allocation5], 0
    %s16 = scalar_lea.sflag [#allocation5], 1
    %17 = vsyncpa %s16, 0
    loop: start=0, step=1, limit=10
    $region2: #{tpu_custom_call.1} parent=1 // loop_pre_header
      _
    $region3: #{tpu_custom_call.1} parent=1 // loop_header
      %s19 = sphi 0, %s23
      %p20 = scmp.ge.s32.totalorder %s19, 10
      %s26 = sphi 0, %s45
      %s27 = sphi 0, %s41
      %s28 = sphi 0, %s37
      %s29 = sphi 0, %s26
      %s30 = sphi 0, %s27
      %s31 = sphi 0, %s28
      %s32 = sphi 0, %s29
      %s33 = sphi 0, %s30
      %s34 = sphi 0, %s31
      %s50 = sphi 0, %s52
      %s53 = sphi 0, %s50
      %s54 = sphi 0, %s53
      %s70 = sphi 0, %s54
      %s76 = sphi 0, %s78
      %s79 = sphi 0, %s76
      %s80 = sphi 0, %s79
      %s96 = sphi 0, %s80
      %s102 = sphi 0, %s104
      %s105 = sphi 0, %s102
      %s106 = sphi 0, %s105
      %s122 = sphi 0, %s106
      %s128 = sphi 0, %s130
      %s131 = sphi 0, %s128
      %s132 = sphi 0, %s131
      %s148 = sphi 0, %s132
      %s158 = sphi 0, %s160
      %s161 = sphi 0, %s158
      %s162 = sphi 0, %s161
      %s178 = sphi 0, %s162
      %s188 = sphi 0, %s190
      %s191 = sphi 0, %s188
      %s192 = sphi 0, %s191
      %s208 = sphi 0, %s192
      %s218 = sphi 0, %s220
      %s221 = sphi 0, %s218
      %s222 = sphi 0, %s221
      %s238 = sphi 0, %s222
    $region4: #{tpu_custom_call.1} parent=1 // loop_header_branch
      %22 = sbr.rel (%p20) target = $region8
    $region5: #{tpu_custom_call.1} parent=1 // loop_body
      %s24 = ssub.s32 %s19, 1
      %s25 = ssub.s32 %s19, 2
      %s35 = sadd.s32 1, %s28
      %p36 = scmp.ge.s32.totalorder %s35, 2
      %s37 = scalar_select %p36, 0, %s35
      %s38 = sadd.s32 1, %s27
      %s39 = scalar_select %p36, %s38, %s27
      %p40 = scmp.ge.s32.totalorder %s39, 2
      %s41 = scalar_select %p40, 0, %s39
      %s42 = sadd.s32 1, %s26
      %s43 = scalar_select %p40, %s42, %s26
      %p44 = scmp.ge.s32.totalorder %s43, 2
      %s45 = scalar_select %p44, 0, %s43
      %s46 = ssub.s32 %s26, %s45
      %s47 = ssub.s32 %s27, %s41
      %s48 = sor.u32 %s46, %s47
      %p49 = scmp.eq.s32.totalorder %s48, 0
      %s51 = sadd.s32 %s50, 1
      %s52 = scalar_select %p49, %s50, %s51
      %p55 = pneg %p49
      %p56 = scmp.eq.s32.totalorder %s19, 7
      %p57 = por %p55, %p56
      %p58 = scmp.ne.s32.totalorder %s50, %s53
      %p59 = scmp.eq.s32.totalorder %s19, 0
      %p60 = por %p58, %p59
      %p61 = scmp.ne.s32.totalorder %s50, %s53
      %p62 = scmp.eq.s32.totalorder %s24, 7
      %p63 = por %p61, %p62
      %p64 = scmp.ne.s32.totalorder %s53, %s54
      %p65 = scmp.eq.s32.totalorder %s24, 0
      %p66 = por %p64, %p65
      %p67 = scmp.ne.s32.totalorder %s53, %s54
      %p68 = scmp.eq.s32.totalorder %s25, 7
      %p69 = por %p67, %p68
      %p71 = scmp.ne.s32.totalorder %s54, %s70
      %p72 = scmp.eq.s32.totalorder %s25, 0
      %p73 = por %p71, %p72
      %s74 = ssub.s32 %s28, %s37
      %p75 = scmp.eq.s32.totalorder %s74, 0
      %s77 = sadd.s32 %s76, 1
      %s78 = scalar_select %p75, %s76, %s77
      %p81 = pneg %p75
      %p82 = scmp.eq.s32.totalorder %s19, 7
      %p83 = por %p81, %p82
      %p84 = scmp.ne.s32.totalorder %s76, %s79
      %p85 = scmp.eq.s32.totalorder %s19, 0
      %p86 = por %p84, %p85
      %p87 = scmp.ne.s32.totalorder %s76, %s79
      %p88 = scmp.eq.s32.totalorder %s24, 7
      %p89 = por %p87, %p88
      %p90 = scmp.ne.s32.totalorder %s79, %s80
      %p91 = scmp.eq.s32.totalorder %s24, 0
      %p92 = por %p90, %p91
      %p93 = scmp.ne.s32.totalorder %s79, %s80
      %p94 = scmp.eq.s32.totalorder %s25, 7
      %p95 = por %p93, %p94
      %p97 = scmp.ne.s32.totalorder %s80, %s96
      %p98 = scmp.eq.s32.totalorder %s25, 0
      %p99 = por %p97, %p98
      %s100 = ssub.s32 %s28, %s37
      %p101 = scmp.eq.s32.totalorder %s100, 0
      %s103 = sadd.s32 %s102, 1
      %s104 = scalar_select %p101, %s102, %s103
      %p107 = pneg %p101
      %p108 = scmp.eq.s32.totalorder %s19, 7
      %p109 = por %p107, %p108
      %p110 = scmp.ne.s32.totalorder %s102, %s105
      %p111 = scmp.eq.s32.totalorder %s19, 0
      %p112 = por %p110, %p111
      %p113 = scmp.ne.s32.totalorder %s102, %s105
      %p114 = scmp.eq.s32.totalorder %s24, 7
      %p115 = por %p113, %p114
      %p116 = scmp.ne.s32.totalorder %s105, %s106
      %p117 = scmp.eq.s32.totalorder %s24, 0
      %p118 = por %p116, %p117
      %p119 = scmp.ne.s32.totalorder %s105, %s106
      %p120 = scmp.eq.s32.totalorder %s25, 7
      %p121 = por %p119, %p120
      %p123 = scmp.ne.s32.totalorder %s106, %s122
      %p124 = scmp.eq.s32.totalorder %s25, 0
      %p125 = por %p123, %p124
      %s126 = ssub.s32 %s28, %s37
      %p127 = scmp.eq.s32.totalorder %s126, 0
      %s129 = sadd.s32 %s128, 1
      %s130 = scalar_select %p127, %s128, %s129
      %p133 = pneg %p127
      %p134 = scmp.eq.s32.totalorder %s19, 7
      %p135 = por %p133, %p134
      %p136 = scmp.ne.s32.totalorder %s128, %s131
      %p137 = scmp.eq.s32.totalorder %s19, 0
      %p138 = por %p136, %p137
      %p139 = scmp.ne.s32.totalorder %s128, %s131
      %p140 = scmp.eq.s32.totalorder %s24, 7
      %p141 = por %p139, %p140
      %p142 = scmp.ne.s32.totalorder %s131, %s132
      %p143 = scmp.eq.s32.totalorder %s24, 0
      %p144 = por %p142, %p143
      %p145 = scmp.ne.s32.totalorder %s131, %s132
      %p146 = scmp.eq.s32.totalorder %s25, 7
      %p147 = por %p145, %p146
      %p149 = scmp.ne.s32.totalorder %s132, %s148
      %p150 = scmp.eq.s32.totalorder %s25, 0
      %p151 = por %p149, %p150
      %s152 = ssub.s32 %s26, %s45
      %s153 = ssub.s32 %s28, %s37
      %s154 = sor.u32 %s152, %s153
      %s155 = ssub.s32 %s27, %s41
      %s156 = sor.u32 %s154, %s155
      %p157 = scmp.eq.s32.totalorder %s156, 0
      %s159 = sadd.s32 %s158, 1
      %s160 = scalar_select %p157, %s158, %s159
      %p163 = pneg %p157
      %p164 = scmp.eq.s32.totalorder %s19, 7
      %p165 = por %p163, %p164
      %p166 = scmp.ne.s32.totalorder %s158, %s161
      %p167 = scmp.eq.s32.totalorder %s19, 0
      %p168 = por %p166, %p167
      %p169 = scmp.ne.s32.totalorder %s158, %s161
      %p170 = scmp.eq.s32.totalorder %s24, 7
      %p171 = por %p169, %p170
      %p172 = scmp.ne.s32.totalorder %s161, %s162
      %p173 = scmp.eq.s32.totalorder %s24, 0
      %p174 = por %p172, %p173
      %p175 = scmp.ne.s32.totalorder %s161, %s162
      %p176 = scmp.eq.s32.totalorder %s25, 7
      %p177 = por %p175, %p176
      %p179 = scmp.ne.s32.totalorder %s162, %s178
      %p180 = scmp.eq.s32.totalorder %s25, 0
      %p181 = por %p179, %p180
      %s182 = ssub.s32 %s26, %s45
      %s183 = ssub.s32 %s28, %s37
      %s184 = sor.u32 %s182, %s183
      %s185 = ssub.s32 %s27, %s41
      %s186 = sor.u32 %s184, %s185
      %p187 = scmp.eq.s32.totalorder %s186, 0
      %s189 = sadd.s32 %s188, 1
      %s190 = scalar_select %p187, %s188, %s189
      %p193 = pneg %p187
      %p194 = scmp.eq.s32.totalorder %s19, 7
      %p195 = por %p193, %p194
      %p196 = scmp.ne.s32.totalorder %s188, %s191
      %p197 = scmp.eq.s32.totalorder %s19, 0
      %p198 = por %p196, %p197
      %p199 = scmp.ne.s32.totalorder %s188, %s191
      %p200 = scmp.eq.s32.totalorder %s24, 7
      %p201 = por %p199, %p200
      %p202 = scmp.ne.s32.totalorder %s191, %s192
      %p203 = scmp.eq.s32.totalorder %s24, 0
      %p204 = por %p202, %p203
      %p205 = scmp.ne.s32.totalorder %s191, %s192
      %p206 = scmp.eq.s32.totalorder %s25, 7
      %p207 = por %p205, %p206
      %p209 = scmp.ne.s32.totalorder %s192, %s208
      %p210 = scmp.eq.s32.totalorder %s25, 0
      %p211 = por %p209, %p210
      %s212 = ssub.s32 %s26, %s45
      %s213 = ssub.s32 %s28, %s37
      %s214 = sor.u32 %s212, %s213
      %s215 = ssub.s32 %s27, %s41
      %s216 = sor.u32 %s214, %s215
      %p217 = scmp.eq.s32.totalorder %s216, 0
      %s219 = sadd.s32 %s218, 1
      %s220 = scalar_select %p217, %s218, %s219
      %p223 = pneg %p217
      %p224 = scmp.eq.s32.totalorder %s19, 7
      %p225 = por %p223, %p224
      %p226 = scmp.ne.s32.totalorder %s218, %s221
      %p227 = scmp.eq.s32.totalorder %s19, 0
      %p228 = por %p226, %p227
      %p229 = scmp.ne.s32.totalorder %s218, %s221
      %p230 = scmp.eq.s32.totalorder %s24, 7
      %p231 = por %p229, %p230
      %p232 = scmp.ne.s32.totalorder %s221, %s222
      %p233 = scmp.eq.s32.totalorder %s24, 0
      %p234 = por %p232, %p233
      %p235 = scmp.ne.s32.totalorder %s221, %s222
      %p236 = scmp.eq.s32.totalorder %s25, 7
      %p237 = por %p235, %p236
      %p239 = scmp.ne.s32.totalorder %s222, %s238
      %p240 = scmp.eq.s32.totalorder %s25, 0
      %p241 = por %p239, %p240
      %p242 = scmp.le.s32.totalorder 1, %s19
      %p243 = scmp.lt.s32.totalorder %s19, 9
      %p244 = pnand %p242, %p243
      %p245 = pneg %p244
      // Predicated region
      $region9: #{tpu_custom_call.1} parent=5 // pred_check
        _
      $region10: #{tpu_custom_call.1} parent=5 // pred_check_branch
        %247 = sbr.rel (%p244) target = $region12
      $region11: #{tpu_custom_call.1} parent=5 // pred_region
        %s248 = ssub.s32 %s19, 1
      $region12: #{tpu_custom_call.1} parent=5 // pred_fallthru
        _
      %p249 = scmp.lt.s32.totalorder %s19, 8
      // Predicated region
      $region13: #{tpu_custom_call.1} parent=5 // pred_check
        %p250 = pneg %p249
      $region14: #{tpu_custom_call.1} parent=5 // pred_check_branch
        %252 = sbr.rel (%p250) target = $region16
      $region15: #{tpu_custom_call.1} parent=5 // pred_region
        // Predicated region
        $region17: #{tpu_custom_call.1} parent=15 // pred_check
          %p253 = pneg %p60
        $region18: #{tpu_custom_call.1} parent=15 // pred_check_branch
          %255 = sbr.rel (%p253) target = $region20
        $region19: #{tpu_custom_call.1} parent=15 // pred_region
          %s256 = smul.u32 2, %s27
          %p257 = scmp.lt.s32.totalorder %s26, 1
          %s258 = scalar_select %p257, %s26, 1
          %p259 = scmp.lt.s32.totalorder %s256, 3
          %s260 = scalar_select %p259, %s256, 3
          %s261 = smul.addr %s260, 2
          %s262 = smul.addr %s258, 8
          %s263 = sadd.s32 %s261, %s262
          %s264 = smul.addr %s263, 4
          %s265 = scalar_lea.vmem %s0, %s264
          %s266 = smul.u32 2, %s27
        $region20: #{tpu_custom_call.1} parent=15 // pred_fallthru
          _
        // Predicated region
        $region21: #{tpu_custom_call.1} parent=15 // pred_check
          %p267 = pneg %p86
        $region22: #{tpu_custom_call.1} parent=15 // pred_check_branch
          %269 = sbr.rel (%p267) target = $region24
        $region23: #{tpu_custom_call.1} parent=15 // pred_region
          %s270 = smul.u32 4, %s28
          %p271 = scmp.lt.s32.totalorder %s270, 7
          %s272 = scalar_select %p271, %s270, 7
          %s273 = smul.addr %s272, 32
          %s274 = smul.addr %s273, 4
          %s275 = scalar_lea.vmem %s1, %s274
          %s276 = smul.u32 4, %s28
        $region24: #{tpu_custom_call.1} parent=15 // pred_fallthru
          _
        // Predicated region
        $region25: #{tpu_custom_call.1} parent=15 // pred_check
          %p277 = pneg %p112
        $region26: #{tpu_custom_call.1} parent=15 // pred_check_branch
          %279 = sbr.rel (%p277) target = $region28
        $region27: #{tpu_custom_call.1} parent=15 // pred_region
          %s280 = smul.u32 4, %s28
          %p281 = scmp.lt.s32.totalorder %s280, 7
          %s282 = scalar_select %p281, %s280, 7
          %s283 = smul.addr %s282, 32
          %s284 = smul.addr %s283, 4
          %s285 = scalar_lea.vmem %s2, %s284
          %s286 = smul.u32 4, %s28
        $region28: #{tpu_custom_call.1} parent=15 // pred_fallthru
          _
        // Predicated region
        $region29: #{tpu_custom_call.1} parent=15 // pred_check
          %p287 = pneg %p138
        $region30: #{tpu_custom_call.1} parent=15 // pred_check_branch
          %289 = sbr.rel (%p287) target = $region32
        $region31: #{tpu_custom_call.1} parent=15 // pred_region
          %s290 = smul.u32 4, %s28
          %p291 = scmp.lt.s32.totalorder %s290, 7
          %s292 = scalar_select %p291, %s290, 7
          %s293 = smul.addr %s292, 32
          %s294 = smul.addr %s293, 4
          %s295 = scalar_lea.vmem %s3, %s294
          %s296 = smul.u32 4, %s28
        $region32: #{tpu_custom_call.1} parent=15 // pred_fallthru
          _
      $region16: #{tpu_custom_call.1} parent=5 // pred_fallthru
        _
      %p297 = scmp.le.s32.totalorder 1, %s19
      %p298 = scmp.lt.s32.totalorder %s19, 9
      %p299 = pnand %p297, %p298
      %p300 = pneg %p299
      // Predicated region
      $region33: #{tpu_custom_call.1} parent=5 // pred_check
        _
      $region34: #{tpu_custom_call.1} parent=5 // pred_check_branch
        %302 = sbr.rel (%p299) target = $region36
      $region35: #{tpu_custom_call.1} parent=5 // pred_region
        %s303 = ssub.s32 %s19, 1
        %s304 = smul.u32 2, %s30
        %p305 = scmp.lt.s32.totalorder %s29, 1
        %s306 = scalar_select %p305, %s29, 1
        %p307 = scmp.lt.s32.totalorder %s304, 3
        %s308 = scalar_select %p307, %s304, 3
        %s309 = smul.addr %s308, 2
        %s310 = smul.addr %s306, 8
        %s311 = sadd.s32 %s309, %s310
        %s312 = smul.addr %s311, 4
        %s313 = scalar_lea.vmem %s0, %s312
        %p314 = pneg %p66
        %p315 = pneg %p63
        %s316 = smul.u32 4, %s31
        %p317 = scmp.lt.s32.totalorder %s316, 7
        %s318 = scalar_select %p317, %s316, 7
        %s319 = smul.addr %s318, 32
        %s320 = smul.addr %s319, 4
        %s321 = scalar_lea.vmem %s1, %s320
        %p322 = pneg %p92
        %p323 = pneg %p89
        %s324 = smul.u32 4, %s31
        %p325 = scmp.lt.s32.totalorder %s324, 7
        %s326 = scalar_select %p325, %s324, 7
        %s327 = smul.addr %s326, 32
        %s328 = smul.addr %s327, 4
        %s329 = scalar_lea.vmem %s2, %s328
        %p330 = pneg %p118
        %p331 = pneg %p115
        %s332 = smul.u32 4, %s31
        %p333 = scmp.lt.s32.totalorder %s332, 7
        %s334 = scalar_select %p333, %s332, 7
        %s335 = smul.addr %s334, 32
        %s336 = smul.addr %s335, 4
        %s337 = scalar_lea.vmem %s3, %s336
        %p338 = pneg %p144
        %p339 = pneg %p141
        %p340 = pneg %p174
        %p341 = pneg %p171
        %s342 = sand.u32 %s161, 1
        %s343 = scalar_lea.sflag [#allocation3], %s342
        %s344 = sand.u32 %s161, 1
        %s345 = smul.addr %s344, 32
        %s346 = scalar_lea.vmem [#allocation2], %s345
        %p347 = pneg %p204
        %p348 = pneg %p201
        %s349 = sand.u32 %s24, 1
        %s350 = scalar_lea.sflag [#allocation5], %s349
        %s351 = sand.u32 %s191, 1
        %s352 = smul.addr %s351, 32
        %s353 = scalar_lea.vmem [#allocation4], %s352
        %p354 = pneg %p234
        %p355 = pneg %p231
        %s356 = sand.u32 %s24, 1
        %s357 = scalar_lea.sflag [#allocation5], %s356
        %s358 = sand.u32 %s221, 1
        %s359 = smul.addr %s358, 32
        %s360 = scalar_lea.vmem [#allocation6], %s359
        %s361 = smul.u32 2, %s30
        %p362 = scmp.lt.s32.totalorder %s29, 1
        %s363 = scalar_select %p362, %s29, 1
        %p364 = scmp.lt.s32.totalorder %s361, 3
        %s365 = scalar_select %p364, %s361, 3
        %s366 = smul.addr %s365, 2
        %s367 = smul.addr %s363, 8
        %s368 = sadd.s32 %s366, %s367
        %s369 = smul.addr %s368, 4
        %s370 = scalar_lea.vmem %s0, %s369
        %s371 = smul.u32 2, %s30
        %s372 = smul.u32 4, %s31
        %p373 = scmp.lt.s32.totalorder %s372, 7
        %s374 = scalar_select %p373, %s372, 7
        %s375 = smul.addr %s374, 32
        %s376 = smul.addr %s375, 4
        %s377 = scalar_lea.vmem %s1, %s376
        %s378 = smul.u32 4, %s31
        %s379 = smul.u32 4, %s31
        %p380 = scmp.lt.s32.totalorder %s379, 7
        %s381 = scalar_select %p380, %s379, 7
        %s382 = smul.addr %s381, 32
        %s383 = smul.addr %s382, 4
        %s384 = scalar_lea.vmem %s2, %s383
        %s385 = smul.u32 4, %s31
        %s386 = smul.u32 4, %s31
        %p387 = scmp.lt.s32.totalorder %s386, 7
        %s388 = scalar_select %p387, %s386, 7
        %s389 = smul.addr %s388, 32
        %s390 = smul.addr %s389, 4
        %s391 = scalar_lea.vmem %s3, %s390
        %s392 = smul.u32 4, %s31
        %s393 = smul.u32 4, %s31
        %s394 = smul.u32 2, %s30
        %s395 = smul.u32 4, %s31
        %s396 = smul.u32 2, %s30
        %s397 = smul.u32 4, %s31
        %s398 = smul.u32 2, %s30
        %v399 = vld [vmem:[%s370] sm:$0xff]
        %v400 = vld [vmem:[%s370 + $0x8] sm:$0xff]
        %v401 = vld [vmem:[%s377] sm:$0xf]
        %v402 = vld [vmem:[%s377 + $0x4] sm:$0xf]
        %v403 = vld [vmem:[%s377 + $0x8] sm:$0xf]
        %v404 = vld [vmem:[%s377 + $0xc] sm:$0xf]
        %v405 = vld [vmem:[%s377 + $0x10] sm:$0xf]
        %v406 = vld [vmem:[%s377 + $0x14] sm:$0xf]
        %v407 = vld [vmem:[%s377 + $0x18] sm:$0xf]
        %v408 = vld [vmem:[%s377 + $0x1c] sm:$0xf]
        %v409 = vld [vmem:[%s377 + $0x20] sm:$0xf]
        %v410 = vld [vmem:[%s377 + $0x24] sm:$0xf]
        %v411 = vld [vmem:[%s377 + $0x28] sm:$0xf]
        %v412 = vld [vmem:[%s377 + $0x2c] sm:$0xf]
        %v413 = vld [vmem:[%s377 + $0x30] sm:$0xf]
        %v414 = vld [vmem:[%s377 + $0x34] sm:$0xf]
        %v415 = vld [vmem:[%s377 + $0x38] sm:$0xf]
        %v416 = vld [vmem:[%s377 + $0x3c] sm:$0xf]
        %v417 = vld [vmem:[%s377 + $0x40] sm:$0xf]
        %v418 = vld [vmem:[%s377 + $0x44] sm:$0xf]
        %v419 = vld [vmem:[%s377 + $0x48] sm:$0xf]
        %v420 = vld [vmem:[%s377 + $0x4c] sm:$0xf]
        %v421 = vld [vmem:[%s377 + $0x50] sm:$0xf]
        %v422 = vld [vmem:[%s377 + $0x54] sm:$0xf]
        %v423 = vld [vmem:[%s377 + $0x58] sm:$0xf]
        %v424 = vld [vmem:[%s377 + $0x5c] sm:$0xf]
        %v425 = vld [vmem:[%s377 + $0x60] sm:$0xf]
        %v426 = vld [vmem:[%s377 + $0x64] sm:$0xf]
        %v427 = vld [vmem:[%s377 + $0x68] sm:$0xf]
        %v428 = vld [vmem:[%s377 + $0x6c] sm:$0xf]
        %v429 = vld [vmem:[%s377 + $0x70] sm:$0xf]
        %v430 = vld [vmem:[%s377 + $0x74] sm:$0xf]
        %v431 = vld [vmem:[%s377 + $0x78] sm:$0xf]
        %v432 = vld [vmem:[%s377 + $0x7c] sm:$0xf]
        %v435 = vunpack.c.l.b16 %v399
        %v436 = vunpack.c.h.b16 %v399
        %v437 = vunpack.c.l.b16 %v400
        %v438 = vunpack.c.h.b16 %v400
        %v439 = vpack.c.b16 %v437, %v435
        %v440 = vpack.c.b16 %v438, %v436
        %v475 = vunpack.c.l.b16 %v401
        %v476 = vunpack.c.l.b16 %v402
        %v477 = vunpack.c.l.b16 %v403
        %v478 = vunpack.c.l.b16 %v404
        %v479 = vunpack.c.l.b16 %v405
        %v480 = vunpack.c.l.b16 %v406
        %v481 = vunpack.c.l.b16 %v407
        %v482 = vunpack.c.l.b16 %v408
        %v483 = vunpack.c.l.b16 %v409
        %v484 = vunpack.c.l.b16 %v410
        %v485 = vunpack.c.l.b16 %v411
        %v486 = vunpack.c.l.b16 %v412
        %v487 = vunpack.c.l.b16 %v413
        %v488 = vunpack.c.l.b16 %v414
        %v489 = vunpack.c.l.b16 %v415
        %v490 = vunpack.c.l.b16 %v416
        %v491 = vunpack.c.l.b16 %v417
        %v492 = vunpack.c.l.b16 %v418
        %v493 = vunpack.c.l.b16 %v419
        %v494 = vunpack.c.l.b16 %v420
        %v495 = vunpack.c.l.b16 %v421
        %v496 = vunpack.c.l.b16 %v422
        %v497 = vunpack.c.l.b16 %v423
        %v498 = vunpack.c.l.b16 %v424
        %v499 = vunpack.c.l.b16 %v425
        %v500 = vunpack.c.l.b16 %v426
        %v501 = vunpack.c.l.b16 %v427
        %v502 = vunpack.c.l.b16 %v428
        %v503 = vunpack.c.l.b16 %v429
        %v504 = vunpack.c.l.b16 %v430
        %v505 = vunpack.c.l.b16 %v431
        %v506 = vunpack.c.l.b16 %v432
        %v507 = vpack.c.b16 %v476, %v475
        %v508 = vpack.c.b16 %v478, %v477
        %v509 = vpack.c.b16 %v480, %v479
        %v510 = vpack.c.b16 %v482, %v481
        %v511 = vpack.c.b16 %v484, %v483
        %v512 = vpack.c.b16 %v486, %v485
        %v513 = vpack.c.b16 %v488, %v487
        %v514 = vpack.c.b16 %v490, %v489
        %v515 = vpack.c.b16 %v492, %v491
        %v516 = vpack.c.b16 %v494, %v493
        %v517 = vpack.c.b16 %v496, %v495
        %v518 = vpack.c.b16 %v498, %v497
        %v519 = vpack.c.b16 %v500, %v499
        %v520 = vpack.c.b16 %v502, %v501
        %v521 = vpack.c.b16 %v504, %v503
        %v522 = vpack.c.b16 %v506, %v505
        %539 = vmatpush.bf16.msra.mxu0 %v514
        %540 = vmatpush.bf16.msra.mxu0 %v513
        %541 = vmatpush.bf16.msra.mxu0 %v512
        %542 = vmatpush.bf16.msra.mxu0 %v511
        %543 = vmatpush.bf16.msra.mxu0 %v510
        %544 = vmatpush.bf16.msra.mxu0 %v509
        %545 = vmatpush.bf16.msra.mxu0 %v508
        %546 = vmatpush.bf16.msra.mxu0 %v507
        %547 = vmatmul.bf16.gmra.mxu0 %v439
        %v548 = vpop.f32.mrf.mxu0
        %v549 = vadd.f32 0.0, %v548
        %v550 = vpop.f32.mrf.mxu0
        %v551 = vadd.f32 0.0, %v550
        %552 = vdwg.mxu0
        %553 = vmatpush.bf16.msra.mxu0 %v522
        %554 = vmatpush.bf16.msra.mxu0 %v521
        %555 = vmatpush.bf16.msra.mxu0 %v520
        %556 = vmatpush.bf16.msra.mxu0 %v519
        %557 = vmatpush.bf16.msra.mxu0 %v518
        %558 = vmatpush.bf16.msra.mxu0 %v517
        %559 = vmatpush.bf16.msra.mxu0 %v516
        %560 = vmatpush.bf16.msra.mxu0 %v515
        %561 = vmatmul.bf16.gmra.mxu0 %v440
        %v562 = vpop.f32.mrf.mxu0
        %v563 = vadd.f32 %v549, %v562
        %v564 = vpop.f32.mrf.mxu0
        %v565 = vadd.f32 %v551, %v564
        %566 = vdwg.mxu0
        %v567 = vmul.f32 %v563, 0.17677669
        %v568 = vmul.f32 %v565, 0.17677669
        %v569 = vpack.c.bf16 %v567, %v567
        %v570 = vpack.c.bf16 %v568, %v568
        %vm571 = vcmask 257024
        %572 = vst.msk [vmem:[%s346] sm:$0xf] %vm571, %v569
        %573 = vst.msk [vmem:[%s346 + $0x4] sm:$0xf] %vm571, %v570
        %v574 = vld [vmem:[%s384] sm:$0xf]
        %v575 = vld [vmem:[%s384 + $0x4] sm:$0xf]
        %v576 = vld [vmem:[%s384 + $0x8] sm:$0xf]
        %v577 = vld [vmem:[%s384 + $0xc] sm:$0xf]
        %v578 = vld [vmem:[%s384 + $0x10] sm:$0xf]
        %v579 = vld [vmem:[%s384 + $0x14] sm:$0xf]
        %v580 = vld [vmem:[%s384 + $0x18] sm:$0xf]
        %v581 = vld [vmem:[%s384 + $0x1c] sm:$0xf]
        %v582 = vld [vmem:[%s384 + $0x20] sm:$0xf]
        %v583 = vld [vmem:[%s384 + $0x24] sm:$0xf]
        %v584 = vld [vmem:[%s384 + $0x28] sm:$0xf]
        %v585 = vld [vmem:[%s384 + $0x2c] sm:$0xf]
        %v586 = vld [vmem:[%s384 + $0x30] sm:$0xf]
        %v587 = vld [vmem:[%s384 + $0x34] sm:$0xf]
        %v588 = vld [vmem:[%s384 + $0x38] sm:$0xf]
        %v589 = vld [vmem:[%s384 + $0x3c] sm:$0xf]
        %v590 = vld [vmem:[%s384 + $0x40] sm:$0xf]
        %v591 = vld [vmem:[%s384 + $0x44] sm:$0xf]
        %v592 = vld [vmem:[%s384 + $0x48] sm:$0xf]
        %v593 = vld [vmem:[%s384 + $0x4c] sm:$0xf]
        %v594 = vld [vmem:[%s384 + $0x50] sm:$0xf]
        %v595 = vld [vmem:[%s384 + $0x54] sm:$0xf]
        %v596 = vld [vmem:[%s384 + $0x58] sm:$0xf]
        %v597 = vld [vmem:[%s384 + $0x5c] sm:$0xf]
        %v598 = vld [vmem:[%s384 + $0x60] sm:$0xf]
        %v599 = vld [vmem:[%s384 + $0x64] sm:$0xf]
        %v600 = vld [vmem:[%s384 + $0x68] sm:$0xf]
        %v601 = vld [vmem:[%s384 + $0x6c] sm:$0xf]
        %v602 = vld [vmem:[%s384 + $0x70] sm:$0xf]
        %v603 = vld [vmem:[%s384 + $0x74] sm:$0xf]
        %v604 = vld [vmem:[%s384 + $0x78] sm:$0xf]
        %v605 = vld [vmem:[%s384 + $0x7c] sm:$0xf]
        %v638 = vunpack.c.l.b16 %v574
        %v639 = vunpack.c.l.b16 %v575
        %v640 = vunpack.c.l.b16 %v576
        %v641 = vunpack.c.l.b16 %v577
        %v642 = vunpack.c.l.b16 %v578
        %v643 = vunpack.c.l.b16 %v579
        %v644 = vunpack.c.l.b16 %v580
        %v645 = vunpack.c.l.b16 %v581
        %v646 = vunpack.c.l.b16 %v582
        %v647 = vunpack.c.l.b16 %v583
        %v648 = vunpack.c.l.b16 %v584
        %v649 = vunpack.c.l.b16 %v585
        %v650 = vunpack.c.l.b16 %v586
        %v651 = vunpack.c.l.b16 %v587
        %v652 = vunpack.c.l.b16 %v588
        %v653 = vunpack.c.l.b16 %v589
        %v654 = vunpack.c.l.b16 %v590
        %v655 = vunpack.c.l.b16 %v591
        %v656 = vunpack.c.l.b16 %v592
        %v657 = vunpack.c.l.b16 %v593
        %v658 = vunpack.c.l.b16 %v594
        %v659 = vunpack.c.l.b16 %v595
        %v660 = vunpack.c.l.b16 %v596
        %v661 = vunpack.c.l.b16 %v597
        %v662 = vunpack.c.l.b16 %v598
        %v663 = vunpack.c.l.b16 %v599
        %v664 = vunpack.c.l.b16 %v600
        %v665 = vunpack.c.l.b16 %v601
        %v666 = vunpack.c.l.b16 %v602
        %v667 = vunpack.c.l.b16 %v603
        %v668 = vunpack.c.l.b16 %v604
        %v669 = vunpack.c.l.b16 %v605
        %v670 = vpack.c.b16 %v639, %v638
        %v671 = vpack.c.b16 %v641, %v640
        %v672 = vpack.c.b16 %v643, %v642
        %v673 = vpack.c.b16 %v645, %v644
        %v674 = vpack.c.b16 %v647, %v646
        %v675 = vpack.c.b16 %v649, %v648
        %v676 = vpack.c.b16 %v651, %v650
        %v677 = vpack.c.b16 %v653, %v652
        %v678 = vpack.c.b16 %v655, %v654
        %v679 = vpack.c.b16 %v657, %v656
        %v680 = vpack.c.b16 %v659, %v658
        %v681 = vpack.c.b16 %v661, %v660
        %v682 = vpack.c.b16 %v663, %v662
        %v683 = vpack.c.b16 %v665, %v664
        %v684 = vpack.c.b16 %v667, %v666
        %v685 = vpack.c.b16 %v669, %v668
        %702 = vmatpush.bf16.msra.mxu0 %v677
        %703 = vmatpush.bf16.msra.mxu0 %v676
        %704 = vmatpush.bf16.msra.mxu0 %v675
        %705 = vmatpush.bf16.msra.mxu0 %v674
        %706 = vmatpush.bf16.msra.mxu0 %v673
        %707 = vmatpush.bf16.msra.mxu0 %v672
        %708 = vmatpush.bf16.msra.mxu0 %v671
        %709 = vmatpush.bf16.msra.mxu0 %v670
        %710 = vmatmul.bf16.gmra.mxu0 %v439
        %v711 = vpop.f32.mrf.mxu0
        %v712 = vadd.f32 0.0, %v711
        %v713 = vpop.f32.mrf.mxu0
        %v714 = vadd.f32 0.0, %v713
        %715 = vdwg.mxu0
        %716 = vmatpush.bf16.msra.mxu0 %v685
        %717 = vmatpush.bf16.msra.mxu0 %v684
        %718 = vmatpush.bf16.msra.mxu0 %v683
        %719 = vmatpush.bf16.msra.mxu0 %v682
        %720 = vmatpush.bf16.msra.mxu0 %v681
        %721 = vmatpush.bf16.msra.mxu0 %v680
        %722 = vmatpush.bf16.msra.mxu0 %v679
        %723 = vmatpush.bf16.msra.mxu0 %v678
        %724 = vmatmul.bf16.gmra.mxu0 %v440
        %v725 = vpop.f32.mrf.mxu0
        %v726 = vadd.f32 %v712, %v725
        %v727 = vpop.f32.mrf.mxu0
        %v728 = vadd.f32 %v714, %v727
        %729 = vdwg.mxu0
        %v730 = vpack.c.bf16 %v726, %v726
        %v731 = vpack.c.bf16 %v728, %v728
        %732 = vst.msk [vmem:[%s353] sm:$0xf] %vm571, %v730
        %733 = vst.msk [vmem:[%s353 + $0x4] sm:$0xf] %vm571, %v731
        %v734 = vld [vmem:[%s391] sm:$0xf]
        %v735 = vld [vmem:[%s391 + $0x4] sm:$0xf]
        %v736 = vld [vmem:[%s391 + $0x8] sm:$0xf]
        %v737 = vld [vmem:[%s391 + $0xc] sm:$0xf]
        %v738 = vld [vmem:[%s391 + $0x10] sm:$0xf]
        %v739 = vld [vmem:[%s391 + $0x14] sm:$0xf]
        %v740 = vld [vmem:[%s391 + $0x18] sm:$0xf]
        %v741 = vld [vmem:[%s391 + $0x1c] sm:$0xf]
        %v742 = vld [vmem:[%s391 + $0x20] sm:$0xf]
        %v743 = vld [vmem:[%s391 + $0x24] sm:$0xf]
        %v744 = vld [vmem:[%s391 + $0x28] sm:$0xf]
        %v745 = vld [vmem:[%s391 + $0x2c] sm:$0xf]
        %v746 = vld [vmem:[%s391 + $0x30] sm:$0xf]
        %v747 = vld [vmem:[%s391 + $0x34] sm:$0xf]
        %v748 = vld [vmem:[%s391 + $0x38] sm:$0xf]
        %v749 = vld [vmem:[%s391 + $0x3c] sm:$0xf]
        %v750 = vld [vmem:[%s391 + $0x40] sm:$0xf]
        %v751 = vld [vmem:[%s391 + $0x44] sm:$0xf]
        %v752 = vld [vmem:[%s391 + $0x48] sm:$0xf]
        %v753 = vld [vmem:[%s391 + $0x4c] sm:$0xf]
        %v754 = vld [vmem:[%s391 + $0x50] sm:$0xf]
        %v755 = vld [vmem:[%s391 + $0x54] sm:$0xf]
        %v756 = vld [vmem:[%s391 + $0x58] sm:$0xf]
        %v757 = vld [vmem:[%s391 + $0x5c] sm:$0xf]
        %v758 = vld [vmem:[%s391 + $0x60] sm:$0xf]
        %v759 = vld [vmem:[%s391 + $0x64] sm:$0xf]
        %v760 = vld [vmem:[%s391 + $0x68] sm:$0xf]
        %v761 = vld [vmem:[%s391 + $0x6c] sm:$0xf]
        %v762 = vld [vmem:[%s391 + $0x70] sm:$0xf]
        %v763 = vld [vmem:[%s391 + $0x74] sm:$0xf]
        %v764 = vld [vmem:[%s391 + $0x78] sm:$0xf]
        %v765 = vld [vmem:[%s391 + $0x7c] sm:$0xf]
        %v798 = vunpack.c.l.b16 %v734
        %v799 = vunpack.c.l.b16 %v735
        %v800 = vunpack.c.l.b16 %v736
        %v801 = vunpack.c.l.b16 %v737
        %v802 = vunpack.c.l.b16 %v738
        %v803 = vunpack.c.l.b16 %v739
        %v804 = vunpack.c.l.b16 %v740
        %v805 = vunpack.c.l.b16 %v741
        %v806 = vunpack.c.l.b16 %v742
        %v807 = vunpack.c.l.b16 %v743
        %v808 = vunpack.c.l.b16 %v744
        %v809 = vunpack.c.l.b16 %v745
        %v810 = vunpack.c.l.b16 %v746
        %v811 = vunpack.c.l.b16 %v747
        %v812 = vunpack.c.l.b16 %v748
        %v813 = vunpack.c.l.b16 %v749
        %v814 = vunpack.c.l.b16 %v750
        %v815 = vunpack.c.l.b16 %v751
        %v816 = vunpack.c.l.b16 %v752
        %v817 = vunpack.c.l.b16 %v753
        %v818 = vunpack.c.l.b16 %v754
        %v819 = vunpack.c.l.b16 %v755
        %v820 = vunpack.c.l.b16 %v756
        %v821 = vunpack.c.l.b16 %v757
        %v822 = vunpack.c.l.b16 %v758
        %v823 = vunpack.c.l.b16 %v759
        %v824 = vunpack.c.l.b16 %v760
        %v825 = vunpack.c.l.b16 %v761
        %v826 = vunpack.c.l.b16 %v762
        %v827 = vunpack.c.l.b16 %v763
        %v828 = vunpack.c.l.b16 %v764
        %v829 = vunpack.c.l.b16 %v765
        %v830 = vpack.c.b16 %v799, %v798
        %v831 = vpack.c.b16 %v801, %v800
        %v832 = vpack.c.b16 %v803, %v802
        %v833 = vpack.c.b16 %v805, %v804
        %v834 = vpack.c.b16 %v807, %v806
        %v835 = vpack.c.b16 %v809, %v808
        %v836 = vpack.c.b16 %v811, %v810
        %v837 = vpack.c.b16 %v813, %v812
        %v838 = vpack.c.b16 %v815, %v814
        %v839 = vpack.c.b16 %v817, %v816
        %v840 = vpack.c.b16 %v819, %v818
        %v841 = vpack.c.b16 %v821, %v820
        %v842 = vpack.c.b16 %v823, %v822
        %v843 = vpack.c.b16 %v825, %v824
        %v844 = vpack.c.b16 %v827, %v826
        %v845 = vpack.c.b16 %v829, %v828
        %862 = vmatpush.bf16.msra.mxu0 %v837
        %863 = vmatpush.bf16.msra.mxu0 %v836
        %864 = vmatpush.bf16.msra.mxu0 %v835
        %865 = vmatpush.bf16.msra.mxu0 %v834
        %866 = vmatpush.bf16.msra.mxu0 %v833
        %867 = vmatpush.bf16.msra.mxu0 %v832
        %868 = vmatpush.bf16.msra.mxu0 %v831
        %869 = vmatpush.bf16.msra.mxu0 %v830
        %870 = vmatmul.bf16.gmra.mxu0 %v439
        %v871 = vpop.f32.mrf.mxu0
        %v872 = vadd.f32 0.0, %v871
        %v873 = vpop.f32.mrf.mxu0
        %v874 = vadd.f32 0.0, %v873
        %875 = vdwg.mxu0
        %876 = vmatpush.bf16.msra.mxu0 %v845
        %877 = vmatpush.bf16.msra.mxu0 %v844
        %878 = vmatpush.bf16.msra.mxu0 %v843
        %879 = vmatpush.bf16.msra.mxu0 %v842
        %880 = vmatpush.bf16.msra.mxu0 %v841
        %881 = vmatpush.bf16.msra.mxu0 %v840
        %882 = vmatpush.bf16.msra.mxu0 %v839
        %883 = vmatpush.bf16.msra.mxu0 %v838
        %884 = vmatmul.bf16.gmra.mxu0 %v440
        %v885 = vpop.f32.mrf.mxu0
        %v886 = vadd.f32 %v872, %v885
        %v887 = vpop.f32.mrf.mxu0
        %v888 = vadd.f32 %v874, %v887
        %889 = vdwg.mxu0
        %v890 = vpack.c.bf16 %v886, %v886
        %v891 = vpack.c.bf16 %v888, %v888
        %892 = vst.msk [vmem:[%s360] sm:$0xf] %vm571, %v890
        %893 = vst.msk [vmem:[%s360 + $0x4] sm:$0xf] %vm571, %v891
        %s894 = scalar_lea.vmem %s377, 128
        %v895 = vld [vmem:[%s894] sm:$0xf]
        %v896 = vld [vmem:[%s894 + $0x4] sm:$0xf]
        %v897 = vld [vmem:[%s894 + $0x8] sm:$0xf]
        %v898 = vld [vmem:[%s894 + $0xc] sm:$0xf]
        %v899 = vld [vmem:[%s894 + $0x10] sm:$0xf]
        %v900 = vld [vmem:[%s894 + $0x14] sm:$0xf]
        %v901 = vld [vmem:[%s894 + $0x18] sm:$0xf]
        %v902 = vld [vmem:[%s894 + $0x1c] sm:$0xf]
        %v903 = vld [vmem:[%s894 + $0x20] sm:$0xf]
        %v904 = vld [vmem:[%s894 + $0x24] sm:$0xf]
        %v905 = vld [vmem:[%s894 + $0x28] sm:$0xf]
        %v906 = vld [vmem:[%s894 + $0x2c] sm:$0xf]
        %v907 = vld [vmem:[%s894 + $0x30] sm:$0xf]
        %v908 = vld [vmem:[%s894 + $0x34] sm:$0xf]
        %v909 = vld [vmem:[%s894 + $0x38] sm:$0xf]
        %v910 = vld [vmem:[%s894 + $0x3c] sm:$0xf]
        %v911 = vld [vmem:[%s894 + $0x40] sm:$0xf]
        %v912 = vld [vmem:[%s894 + $0x44] sm:$0xf]
        %v913 = vld [vmem:[%s894 + $0x48] sm:$0xf]
        %v914 = vld [vmem:[%s894 + $0x4c] sm:$0xf]
        %v915 = vld [vmem:[%s894 + $0x50] sm:$0xf]
        %v916 = vld [vmem:[%s894 + $0x54] sm:$0xf]
        %v917 = vld [vmem:[%s894 + $0x58] sm:$0xf]
        %v918 = vld [vmem:[%s894 + $0x5c] sm:$0xf]
        %v919 = vld [vmem:[%s894 + $0x60] sm:$0xf]
        %v920 = vld [vmem:[%s894 + $0x64] sm:$0xf]
        %v921 = vld [vmem:[%s894 + $0x68] sm:$0xf]
        %v922 = vld [vmem:[%s894 + $0x6c] sm:$0xf]
        %v923 = vld [vmem:[%s894 + $0x70] sm:$0xf]
        %v924 = vld [vmem:[%s894 + $0x74] sm:$0xf]
        %v925 = vld [vmem:[%s894 + $0x78] sm:$0xf]
        %v926 = vld [vmem:[%s894 + $0x7c] sm:$0xf]
        %v959 = vunpack.c.l.b16 %v895
        %v960 = vunpack.c.l.b16 %v896
        %v961 = vunpack.c.l.b16 %v897
        %v962 = vunpack.c.l.b16 %v898
        %v963 = vunpack.c.l.b16 %v899
        %v964 = vunpack.c.l.b16 %v900
        %v965 = vunpack.c.l.b16 %v901
        %v966 = vunpack.c.l.b16 %v902
        %v967 = vunpack.c.l.b16 %v903
        %v968 = vunpack.c.l.b16 %v904
        %v969 = vunpack.c.l.b16 %v905
        %v970 = vunpack.c.l.b16 %v906
        %v971 = vunpack.c.l.b16 %v907
        %v972 = vunpack.c.l.b16 %v908
        %v973 = vunpack.c.l.b16 %v909
        %v974 = vunpack.c.l.b16 %v910
        %v975 = vunpack.c.l.b16 %v911
        %v976 = vunpack.c.l.b16 %v912
        %v977 = vunpack.c.l.b16 %v913
        %v978 = vunpack.c.l.b16 %v914
        %v979 = vunpack.c.l.b16 %v915
        %v980 = vunpack.c.l.b16 %v916
        %v981 = vunpack.c.l.b16 %v917
        %v982 = vunpack.c.l.b16 %v918
        %v983 = vunpack.c.l.b16 %v919
        %v984 = vunpack.c.l.b16 %v920
        %v985 = vunpack.c.l.b16 %v921
        %v986 = vunpack.c.l.b16 %v922
        %v987 = vunpack.c.l.b16 %v923
        %v988 = vunpack.c.l.b16 %v924
        %v989 = vunpack.c.l.b16 %v925
        %v990 = vunpack.c.l.b16 %v926
        %v991 = vpack.c.b16 %v960, %v959
        %v992 = vpack.c.b16 %v962, %v961
        %v993 = vpack.c.b16 %v964, %v963
        %v994 = vpack.c.b16 %v966, %v965
        %v995 = vpack.c.b16 %v968, %v967
        %v996 = vpack.c.b16 %v970, %v969
        %v997 = vpack.c.b16 %v972, %v971
        %v998 = vpack.c.b16 %v974, %v973
        %v999 = vpack.c.b16 %v976, %v975
        %v1000 = vpack.c.b16 %v978, %v977
        %v1001 = vpack.c.b16 %v980, %v979
        %v1002 = vpack.c.b16 %v982, %v981
        %v1003 = vpack.c.b16 %v984, %v983
        %v1004 = vpack.c.b16 %v986, %v985
        %v1005 = vpack.c.b16 %v988, %v987
        %v1006 = vpack.c.b16 %v990, %v989
        %1023 = vmatpush.bf16.msra.mxu0 %v998
        %1024 = vmatpush.bf16.msra.mxu0 %v997
        %1025 = vmatpush.bf16.msra.mxu0 %v996
        %1026 = vmatpush.bf16.msra.mxu0 %v995
        %1027 = vmatpush.bf16.msra.mxu0 %v994
        %1028 = vmatpush.bf16.msra.mxu0 %v993
        %1029 = vmatpush.bf16.msra.mxu0 %v992
        %1030 = vmatpush.bf16.msra.mxu0 %v991
        %1031 = vmatmul.bf16.gmra.mxu0 %v439
        %v1032 = vpop.f32.mrf.mxu0
        %v1033 = vadd.f32 0.0, %v1032
        %v1034 = vpop.f32.mrf.mxu0
        %v1035 = vadd.f32 0.0, %v1034
        %1036 = vdwg.mxu0
        %1037 = vmatpush.bf16.msra.mxu0 %v1006
        %1038 = vmatpush.bf16.msra.mxu0 %v1005
        %1039 = vmatpush.bf16.msra.mxu0 %v1004
        %1040 = vmatpush.bf16.msra.mxu0 %v1003
        %1041 = vmatpush.bf16.msra.mxu0 %v1002
        %1042 = vmatpush.bf16.msra.mxu0 %v1001
        %1043 = vmatpush.bf16.msra.mxu0 %v1000
        %1044 = vmatpush.bf16.msra.mxu0 %v999
        %1045 = vmatmul.bf16.gmra.mxu0 %v440
        %v1046 = vpop.f32.mrf.mxu0
        %v1047 = vadd.f32 %v1033, %v1046
        %v1048 = vpop.f32.mrf.mxu0
        %v1049 = vadd.f32 %v1035, %v1048
        %1050 = vdwg.mxu0
        %v1051 = vmul.f32 %v1047, 0.17677669
        %v1052 = vmul.f32 %v1049, 0.17677669
        %v1053 = vpack.c.bf16 %v1051, %v1051
        %v1054 = vpack.c.bf16 %v1052, %v1052
        %s1055 = scalar_lea.vmem %s346, 8 [#allocation2]
        %1056 = vst.msk [vmem:[%s1055] sm:$0xf] %vm571, %v1053
        %1057 = vst.msk [vmem:[%s1055 + $0x4] sm:$0xf] %vm571, %v1054
        %s1058 = scalar_lea.vmem %s384, 128
        %v1059 = vld [vmem:[%s1058] sm:$0xf]
        %v1060 = vld [vmem:[%s1058 + $0x4] sm:$0xf]
        %v1061 = vld [vmem:[%s1058 + $0x8] sm:$0xf]
        %v1062 = vld [vmem:[%s1058 + $0xc] sm:$0xf]
        %v1063 = vld [vmem:[%s1058 + $0x10] sm:$0xf]
        %v1064 = vld [vmem:[%s1058 + $0x14] sm:$0xf]
        %v1065 = vld [vmem:[%s1058 + $0x18] sm:$0xf]
        %v1066 = vld [vmem:[%s1058 + $0x1c] sm:$0xf]
        %v1067 = vld [vmem:[%s1058 + $0x20] sm:$0xf]
        %v1068 = vld [vmem:[%s1058 + $0x24] sm:$0xf]
        %v1069 = vld [vmem:[%s1058 + $0x28] sm:$0xf]
        %v1070 = vld [vmem:[%s1058 + $0x2c] sm:$0xf]
        %v1071 = vld [vmem:[%s1058 + $0x30] sm:$0xf]
        %v1072 = vld [vmem:[%s1058 + $0x34] sm:$0xf]
        %v1073 = vld [vmem:[%s1058 + $0x38] sm:$0xf]
        %v1074 = vld [vmem:[%s1058 + $0x3c] sm:$0xf]
        %v1075 = vld [vmem:[%s1058 + $0x40] sm:$0xf]
        %v1076 = vld [vmem:[%s1058 + $0x44] sm:$0xf]
        %v1077 = vld [vmem:[%s1058 + $0x48] sm:$0xf]
        %v1078 = vld [vmem:[%s1058 + $0x4c] sm:$0xf]
        %v1079 = vld [vmem:[%s1058 + $0x50] sm:$0xf]
        %v1080 = vld [vmem:[%s1058 + $0x54] sm:$0xf]
        %v1081 = vld [vmem:[%s1058 + $0x58] sm:$0xf]
        %v1082 = vld [vmem:[%s1058 + $0x5c] sm:$0xf]
        %v1083 = vld [vmem:[%s1058 + $0x60] sm:$0xf]
        %v1084 = vld [vmem:[%s1058 + $0x64] sm:$0xf]
        %v1085 = vld [vmem:[%s1058 + $0x68] sm:$0xf]
        %v1086 = vld [vmem:[%s1058 + $0x6c] sm:$0xf]
        %v1087 = vld [vmem:[%s1058 + $0x70] sm:$0xf]
        %v1088 = vld [vmem:[%s1058 + $0x74] sm:$0xf]
        %v1089 = vld [vmem:[%s1058 + $0x78] sm:$0xf]
        %v1090 = vld [vmem:[%s1058 + $0x7c] sm:$0xf]
        %v1123 = vunpack.c.l.b16 %v1059
        %v1124 = vunpack.c.l.b16 %v1060
        %v1125 = vunpack.c.l.b16 %v1061
        %v1126 = vunpack.c.l.b16 %v1062
        %v1127 = vunpack.c.l.b16 %v1063
        %v1128 = vunpack.c.l.b16 %v1064
        %v1129 = vunpack.c.l.b16 %v1065
        %v1130 = vunpack.c.l.b16 %v1066
        %v1131 = vunpack.c.l.b16 %v1067
        %v1132 = vunpack.c.l.b16 %v1068
        %v1133 = vunpack.c.l.b16 %v1069
        %v1134 = vunpack.c.l.b16 %v1070
        %v1135 = vunpack.c.l.b16 %v1071
        %v1136 = vunpack.c.l.b16 %v1072
        %v1137 = vunpack.c.l.b16 %v1073
        %v1138 = vunpack.c.l.b16 %v1074
        %v1139 = vunpack.c.l.b16 %v1075
        %v1140 = vunpack.c.l.b16 %v1076
        %v1141 = vunpack.c.l.b16 %v1077
        %v1142 = vunpack.c.l.b16 %v1078
        %v1143 = vunpack.c.l.b16 %v1079
        %v1144 = vunpack.c.l.b16 %v1080
        %v1145 = vunpack.c.l.b16 %v1081
        %v1146 = vunpack.c.l.b16 %v1082
        %v1147 = vunpack.c.l.b16 %v1083
        %v1148 = vunpack.c.l.b16 %v1084
        %v1149 = vunpack.c.l.b16 %v1085
        %v1150 = vunpack.c.l.b16 %v1086
        %v1151 = vunpack.c.l.b16 %v1087
        %v1152 = vunpack.c.l.b16 %v1088
        %v1153 = vunpack.c.l.b16 %v1089
        %v1154 = vunpack.c.l.b16 %v1090
        %v1155 = vpack.c.b16 %v1124, %v1123
        %v1156 = vpack.c.b16 %v1126, %v1125
        %v1157 = vpack.c.b16 %v1128, %v1127
        %v1158 = vpack.c.b16 %v1130, %v1129
        %v1159 = vpack.c.b16 %v1132, %v1131
        %v1160 = vpack.c.b16 %v1134, %v1133
        %v1161 = vpack.c.b16 %v1136, %v1135
        %v1162 = vpack.c.b16 %v1138, %v1137
        %v1163 = vpack.c.b16 %v1140, %v1139
        %v1164 = vpack.c.b16 %v1142, %v1141
        %v1165 = vpack.c.b16 %v1144, %v1143
        %v1166 = vpack.c.b16 %v1146, %v1145
        %v1167 = vpack.c.b16 %v1148, %v1147
        %v1168 = vpack.c.b16 %v1150, %v1149
        %v1169 = vpack.c.b16 %v1152, %v1151
        %v1170 = vpack.c.b16 %v1154, %v1153
        %1187 = vmatpush.bf16.msra.mxu0 %v1162
        %1188 = vmatpush.bf16.msra.mxu0 %v1161
        %1189 = vmatpush.bf16.msra.mxu0 %v1160
        %1190 = vmatpush.bf16.msra.mxu0 %v1159
        %1191 = vmatpush.bf16.msra.mxu0 %v1158
        %1192 = vmatpush.bf16.msra.mxu0 %v1157
        %1193 = vmatpush.bf16.msra.mxu0 %v1156
        %1194 = vmatpush.bf16.msra.mxu0 %v1155
        %1195 = vmatmul.bf16.gmra.mxu0 %v439
        %v1196 = vpop.f32.mrf.mxu0
        %v1197 = vadd.f32 0.0, %v1196
        %v1198 = vpop.f32.mrf.mxu0
        %v1199 = vadd.f32 0.0, %v1198
        %1200 = vdwg.mxu0
        %1201 = vmatpush.bf16.msra.mxu0 %v1170
        %1202 = vmatpush.bf16.msra.mxu0 %v1169
        %1203 = vmatpush.bf16.msra.mxu0 %v1168
        %1204 = vmatpush.bf16.msra.mxu0 %v1167
        %1205 = vmatpush.bf16.msra.mxu0 %v1166
        %1206 = vmatpush.bf16.msra.mxu0 %v1165
        %1207 = vmatpush.bf16.msra.mxu0 %v1164
        %1208 = vmatpush.bf16.msra.mxu0 %v1163
        %1209 = vmatmul.bf16.gmra.mxu0 %v440
        %v1210 = vpop.f32.mrf.mxu0
        %v1211 = vadd.f32 %v1197, %v1210
        %v1212 = vpop.f32.mrf.mxu0
        %v1213 = vadd.f32 %v1199, %v1212
        %1214 = vdwg.mxu0
        %v1215 = vpack.c.bf16 %v1211, %v1211
        %v1216 = vpack.c.bf16 %v1213, %v1213
        %s1217 = scalar_lea.vmem %s353, 8 [#allocation4]
        %1218 = vst.msk [vmem:[%s1217] sm:$0xf] %vm571, %v1215
        %1219 = vst.msk [vmem:[%s1217 + $0x4] sm:$0xf] %vm571, %v1216
        %s1220 = scalar_lea.vmem %s391, 128
        %v1221 = vld [vmem:[%s1220] sm:$0xf]
        %v1222 = vld [vmem:[%s1220 + $0x4] sm:$0xf]
        %v1223 = vld [vmem:[%s1220 + $0x8] sm:$0xf]
        %v1224 = vld [vmem:[%s1220 + $0xc] sm:$0xf]
        %v1225 = vld [vmem:[%s1220 + $0x10] sm:$0xf]
        %v1226 = vld [vmem:[%s1220 + $0x14] sm:$0xf]
        %v1227 = vld [vmem:[%s1220 + $0x18] sm:$0xf]
        %v1228 = vld [vmem:[%s1220 + $0x1c] sm:$0xf]
        %v1229 = vld [vmem:[%s1220 + $0x20] sm:$0xf]
        %v1230 = vld [vmem:[%s1220 + $0x24] sm:$0xf]
        %v1231 = vld [vmem:[%s1220 + $0x28] sm:$0xf]
        %v1232 = vld [vmem:[%s1220 + $0x2c] sm:$0xf]
        %v1233 = vld [vmem:[%s1220 + $0x30] sm:$0xf]
        %v1234 = vld [vmem:[%s1220 + $0x34] sm:$0xf]
        %v1235 = vld [vmem:[%s1220 + $0x38] sm:$0xf]
        %v1236 = vld [vmem:[%s1220 + $0x3c] sm:$0xf]
        %v1237 = vld [vmem:[%s1220 + $0x40] sm:$0xf]
        %v1238 = vld [vmem:[%s1220 + $0x44] sm:$0xf]
        %v1239 = vld [vmem:[%s1220 + $0x48] sm:$0xf]
        %v1240 = vld [vmem:[%s1220 + $0x4c] sm:$0xf]
        %v1241 = vld [vmem:[%s1220 + $0x50] sm:$0xf]
        %v1242 = vld [vmem:[%s1220 + $0x54] sm:$0xf]
        %v1243 = vld [vmem:[%s1220 + $0x58] sm:$0xf]
        %v1244 = vld [vmem:[%s1220 + $0x5c] sm:$0xf]
        %v1245 = vld [vmem:[%s1220 + $0x60] sm:$0xf]
        %v1246 = vld [vmem:[%s1220 + $0x64] sm:$0xf]
        %v1247 = vld [vmem:[%s1220 + $0x68] sm:$0xf]
        %v1248 = vld [vmem:[%s1220 + $0x6c] sm:$0xf]
        %v1249 = vld [vmem:[%s1220 + $0x70] sm:$0xf]
        %v1250 = vld [vmem:[%s1220 + $0x74] sm:$0xf]
        %v1251 = vld [vmem:[%s1220 + $0x78] sm:$0xf]
        %v1252 = vld [vmem:[%s1220 + $0x7c] sm:$0xf]
        %v1285 = vunpack.c.l.b16 %v1221
        %v1286 = vunpack.c.l.b16 %v1222
        %v1287 = vunpack.c.l.b16 %v1223
        %v1288 = vunpack.c.l.b16 %v1224
        %v1289 = vunpack.c.l.b16 %v1225
        %v1290 = vunpack.c.l.b16 %v1226
        %v1291 = vunpack.c.l.b16 %v1227
        %v1292 = vunpack.c.l.b16 %v1228
        %v1293 = vunpack.c.l.b16 %v1229
        %v1294 = vunpack.c.l.b16 %v1230
        %v1295 = vunpack.c.l.b16 %v1231
        %v1296 = vunpack.c.l.b16 %v1232
        %v1297 = vunpack.c.l.b16 %v1233
        %v1298 = vunpack.c.l.b16 %v1234
        %v1299 = vunpack.c.l.b16 %v1235
        %v1300 = vunpack.c.l.b16 %v1236
        %v1301 = vunpack.c.l.b16 %v1237
        %v1302 = vunpack.c.l.b16 %v1238
        %v1303 = vunpack.c.l.b16 %v1239
        %v1304 = vunpack.c.l.b16 %v1240
        %v1305 = vunpack.c.l.b16 %v1241
        %v1306 = vunpack.c.l.b16 %v1242
        %v1307 = vunpack.c.l.b16 %v1243
        %v1308 = vunpack.c.l.b16 %v1244
        %v1309 = vunpack.c.l.b16 %v1245
        %v1310 = vunpack.c.l.b16 %v1246
        %v1311 = vunpack.c.l.b16 %v1247
        %v1312 = vunpack.c.l.b16 %v1248
        %v1313 = vunpack.c.l.b16 %v1249
        %v1314 = vunpack.c.l.b16 %v1250
        %v1315 = vunpack.c.l.b16 %v1251
        %v1316 = vunpack.c.l.b16 %v1252
        %v1317 = vpack.c.b16 %v1286, %v1285
        %v1318 = vpack.c.b16 %v1288, %v1287
        %v1319 = vpack.c.b16 %v1290, %v1289
        %v1320 = vpack.c.b16 %v1292, %v1291
        %v1321 = vpack.c.b16 %v1294, %v1293
        %v1322 = vpack.c.b16 %v1296, %v1295
        %v1323 = vpack.c.b16 %v1298, %v1297
        %v1324 = vpack.c.b16 %v1300, %v1299
        %v1325 = vpack.c.b16 %v1302, %v1301
        %v1326 = vpack.c.b16 %v1304, %v1303
        %v1327 = vpack.c.b16 %v1306, %v1305
        %v1328 = vpack.c.b16 %v1308, %v1307
        %v1329 = vpack.c.b16 %v1310, %v1309
        %v1330 = vpack.c.b16 %v1312, %v1311
        %v1331 = vpack.c.b16 %v1314, %v1313
        %v1332 = vpack.c.b16 %v1316, %v1315
        %1349 = vmatpush.bf16.msra.mxu0 %v1324
        %1350 = vmatpush.bf16.msra.mxu0 %v1323
        %1351 = vmatpush.bf16.msra.mxu0 %v1322
        %1352 = vmatpush.bf16.msra.mxu0 %v1321
        %1353 = vmatpush.bf16.msra.mxu0 %v1320
        %1354 = vmatpush.bf16.msra.mxu0 %v1319
        %1355 = vmatpush.bf16.msra.mxu0 %v1318
        %1356 = vmatpush.bf16.msra.mxu0 %v1317
        %1357 = vmatmul.bf16.gmra.mxu0 %v439
        %v1358 = vpop.f32.mrf.mxu0
        %v1359 = vadd.f32 0.0, %v1358
        %v1360 = vpop.f32.mrf.mxu0
        %v1361 = vadd.f32 0.0, %v1360
        %1362 = vdwg.mxu0
        %1363 = vmatpush.bf16.msra.mxu0 %v1332
        %1364 = vmatpush.bf16.msra.mxu0 %v1331
        %1365 = vmatpush.bf16.msra.mxu0 %v1330
        %1366 = vmatpush.bf16.msra.mxu0 %v1329
        %1367 = vmatpush.bf16.msra.mxu0 %v1328
        %1368 = vmatpush.bf16.msra.mxu0 %v1327
        %1369 = vmatpush.bf16.msra.mxu0 %v1326
        %1370 = vmatpush.bf16.msra.mxu0 %v1325
        %1371 = vmatmul.bf16.gmra.mxu0 %v440
        %v1372 = vpop.f32.mrf.mxu0
        %v1373 = vadd.f32 %v1359, %v1372
        %v1374 = vpop.f32.mrf.mxu0
        %v1375 = vadd.f32 %v1361, %v1374
        %1376 = vdwg.mxu0
        %v1377 = vpack.c.bf16 %v1373, %v1373
        %v1378 = vpack.c.bf16 %v1375, %v1375
        %s1379 = scalar_lea.vmem %s360, 8 [#allocation6]
        %1380 = vst.msk [vmem:[%s1379] sm:$0xf] %vm571, %v1377
        %1381 = vst.msk [vmem:[%s1379 + $0x4] sm:$0xf] %vm571, %v1378
        %s1382 = scalar_lea.vmem %s377, 256
        %v1383 = vld [vmem:[%s1382] sm:$0xf]
        %v1384 = vld [vmem:[%s1382 + $0x4] sm:$0xf]
        %v1385 = vld [vmem:[%s1382 + $0x8] sm:$0xf]
        %v1386 = vld [vmem:[%s1382 + $0xc] sm:$0xf]
        %v1387 = vld [vmem:[%s1382 + $0x10] sm:$0xf]
        %v1388 = vld [vmem:[%s1382 + $0x14] sm:$0xf]
        %v1389 = vld [vmem:[%s1382 + $0x18] sm:$0xf]
        %v1390 = vld [vmem:[%s1382 + $0x1c] sm:$0xf]
        %v1391 = vld [vmem:[%s1382 + $0x20] sm:$0xf]
        %v1392 = vld [vmem:[%s1382 + $0x24] sm:$0xf]
        %v1393 = vld [vmem:[%s1382 + $0x28] sm:$0xf]
        %v1394 = vld [vmem:[%s1382 + $0x2c] sm:$0xf]
        %v1395 = vld [vmem:[%s1382 + $0x30] sm:$0xf]
        %v1396 = vld [vmem:[%s1382 + $0x34] sm:$0xf]
        %v1397 = vld [vmem:[%s1382 + $0x38] sm:$0xf]
        %v1398 = vld [vmem:[%s1382 + $0x3c] sm:$0xf]
        %v1399 = vld [vmem:[%s1382 + $0x40] sm:$0xf]
        %v1400 = vld [vmem:[%s1382 + $0x44] sm:$0xf]
        %v1401 = vld [vmem:[%s1382 + $0x48] sm:$0xf]
        %v1402 = vld [vmem:[%s1382 + $0x4c] sm:$0xf]
        %v1403 = vld [vmem:[%s1382 + $0x50] sm:$0xf]
        %v1404 = vld [vmem:[%s1382 + $0x54] sm:$0xf]
        %v1405 = vld [vmem:[%s1382 + $0x58] sm:$0xf]
        %v1406 = vld [vmem:[%s1382 + $0x5c] sm:$0xf]
        %v1407 = vld [vmem:[%s1382 + $0x60] sm:$0xf]
        %v1408 = vld [vmem:[%s1382 + $0x64] sm:$0xf]
        %v1409 = vld [vmem:[%s1382 + $0x68] sm:$0xf]
        %v1410 = vld [vmem:[%s1382 + $0x6c] sm:$0xf]
        %v1411 = vld [vmem:[%s1382 + $0x70] sm:$0xf]
        %v1412 = vld [vmem:[%s1382 + $0x74] sm:$0xf]
        %v1413 = vld [vmem:[%s1382 + $0x78] sm:$0xf]
        %v1414 = vld [vmem:[%s1382 + $0x7c] sm:$0xf]
        %v1447 = vunpack.c.l.b16 %v1383
        %v1448 = vunpack.c.l.b16 %v1384
        %v1449 = vunpack.c.l.b16 %v1385
        %v1450 = vunpack.c.l.b16 %v1386
        %v1451 = vunpack.c.l.b16 %v1387
        %v1452 = vunpack.c.l.b16 %v1388
        %v1453 = vunpack.c.l.b16 %v1389
        %v1454 = vunpack.c.l.b16 %v1390
        %v1455 = vunpack.c.l.b16 %v1391
        %v1456 = vunpack.c.l.b16 %v1392
        %v1457 = vunpack.c.l.b16 %v1393
        %v1458 = vunpack.c.l.b16 %v1394
        %v1459 = vunpack.c.l.b16 %v1395
        %v1460 = vunpack.c.l.b16 %v1396
        %v1461 = vunpack.c.l.b16 %v1397
        %v1462 = vunpack.c.l.b16 %v1398
        %v1463 = vunpack.c.l.b16 %v1399
        %v1464 = vunpack.c.l.b16 %v1400
        %v1465 = vunpack.c.l.b16 %v1401
        %v1466 = vunpack.c.l.b16 %v1402
        %v1467 = vunpack.c.l.b16 %v1403
        %v1468 = vunpack.c.l.b16 %v1404
        %v1469 = vunpack.c.l.b16 %v1405
        %v1470 = vunpack.c.l.b16 %v1406
        %v1471 = vunpack.c.l.b16 %v1407
        %v1472 = vunpack.c.l.b16 %v1408
        %v1473 = vunpack.c.l.b16 %v1409
        %v1474 = vunpack.c.l.b16 %v1410
        %v1475 = vunpack.c.l.b16 %v1411
        %v1476 = vunpack.c.l.b16 %v1412
        %v1477 = vunpack.c.l.b16 %v1413
        %v1478 = vunpack.c.l.b16 %v1414
        %v1479 = vpack.c.b16 %v1448, %v1447
        %v1480 = vpack.c.b16 %v1450, %v1449
        %v1481 = vpack.c.b16 %v1452, %v1451
        %v1482 = vpack.c.b16 %v1454, %v1453
        %v1483 = vpack.c.b16 %v1456, %v1455
        %v1484 = vpack.c.b16 %v1458, %v1457
        %v1485 = vpack.c.b16 %v1460, %v1459
        %v1486 = vpack.c.b16 %v1462, %v1461
        %v1487 = vpack.c.b16 %v1464, %v1463
        %v1488 = vpack.c.b16 %v1466, %v1465
        %v1489 = vpack.c.b16 %v1468, %v1467
        %v1490 = vpack.c.b16 %v1470, %v1469
        %v1491 = vpack.c.b16 %v1472, %v1471
        %v1492 = vpack.c.b16 %v1474, %v1473
        %v1493 = vpack.c.b16 %v1476, %v1475
        %v1494 = vpack.c.b16 %v1478, %v1477
        %1511 = vmatpush.bf16.msra.mxu0 %v1486
        %1512 = vmatpush.bf16.msra.mxu0 %v1485
        %1513 = vmatpush.bf16.msra.mxu0 %v1484
        %1514 = vmatpush.bf16.msra.mxu0 %v1483
        %1515 = vmatpush.bf16.msra.mxu0 %v1482
        %1516 = vmatpush.bf16.msra.mxu0 %v1481
        %1517 = vmatpush.bf16.msra.mxu0 %v1480
        %1518 = vmatpush.bf16.msra.mxu0 %v1479
        %1519 = vmatmul.bf16.gmra.mxu0 %v439
        %v1520 = vpop.f32.mrf.mxu0
        %v1521 = vadd.f32 0.0, %v1520
        %v1522 = vpop.f32.mrf.mxu0
        %v1523 = vadd.f32 0.0, %v1522
        %1524 = vdwg.mxu0
        %1525 = vmatpush.bf16.msra.mxu0 %v1494
        %1526 = vmatpush.bf16.msra.mxu0 %v1493
        %1527 = vmatpush.bf16.msra.mxu0 %v1492
        %1528 = vmatpush.bf16.msra.mxu0 %v1491
        %1529 = vmatpush.bf16.msra.mxu0 %v1490
        %1530 = vmatpush.bf16.msra.mxu0 %v1489
        %1531 = vmatpush.bf16.msra.mxu0 %v1488
        %1532 = vmatpush.bf16.msra.mxu0 %v1487
        %1533 = vmatmul.bf16.gmra.mxu0 %v440
        %v1534 = vpop.f32.mrf.mxu0
        %v1535 = vadd.f32 %v1521, %v1534
        %v1536 = vpop.f32.mrf.mxu0
        %v1537 = vadd.f32 %v1523, %v1536
        %1538 = vdwg.mxu0
        %v1539 = vmul.f32 %v1535, 0.17677669
        %v1540 = vmul.f32 %v1537, 0.17677669
        %v1541 = vpack.c.bf16 %v1539, %v1539
        %v1542 = vpack.c.bf16 %v1540, %v1540
        %s1543 = scalar_lea.vmem %s346, 16 [#allocation2]
        %1544 = vst.msk [vmem:[%s1543] sm:$0xf] %vm571, %v1541
        %1545 = vst.msk [vmem:[%s1543 + $0x4] sm:$0xf] %vm571, %v1542
        %s1546 = scalar_lea.vmem %s384, 256
        %v1547 = vld [vmem:[%s1546] sm:$0xf]
        %v1548 = vld [vmem:[%s1546 + $0x4] sm:$0xf]
        %v1549 = vld [vmem:[%s1546 + $0x8] sm:$0xf]
        %v1550 = vld [vmem:[%s1546 + $0xc] sm:$0xf]
        %v1551 = vld [vmem:[%s1546 + $0x10] sm:$0xf]
        %v1552 = vld [vmem:[%s1546 + $0x14] sm:$0xf]
        %v1553 = vld [vmem:[%s1546 + $0x18] sm:$0xf]
        %v1554 = vld [vmem:[%s1546 + $0x1c] sm:$0xf]
        %v1555 = vld [vmem:[%s1546 + $0x20] sm:$0xf]
        %v1556 = vld [vmem:[%s1546 + $0x24] sm:$0xf]
        %v1557 = vld [vmem:[%s1546 + $0x28] sm:$0xf]
        %v1558 = vld [vmem:[%s1546 + $0x2c] sm:$0xf]
        %v1559 = vld [vmem:[%s1546 + $0x30] sm:$0xf]
        %v1560 = vld [vmem:[%s1546 + $0x34] sm:$0xf]
        %v1561 = vld [vmem:[%s1546 + $0x38] sm:$0xf]
        %v1562 = vld [vmem:[%s1546 + $0x3c] sm:$0xf]
        %v1563 = vld [vmem:[%s1546 + $0x40] sm:$0xf]
        %v1564 = vld [vmem:[%s1546 + $0x44] sm:$0xf]
        %v1565 = vld [vmem:[%s1546 + $0x48] sm:$0xf]
        %v1566 = vld [vmem:[%s1546 + $0x4c] sm:$0xf]
        %v1567 = vld [vmem:[%s1546 + $0x50] sm:$0xf]
        %v1568 = vld [vmem:[%s1546 + $0x54] sm:$0xf]
        %v1569 = vld [vmem:[%s1546 + $0x58] sm:$0xf]
        %v1570 = vld [vmem:[%s1546 + $0x5c] sm:$0xf]
        %v1571 = vld [vmem:[%s1546 + $0x60] sm:$0xf]
        %v1572 = vld [vmem:[%s1546 + $0x64] sm:$0xf]
        %v1573 = vld [vmem:[%s1546 + $0x68] sm:$0xf]
        %v1574 = vld [vmem:[%s1546 + $0x6c] sm:$0xf]
        %v1575 = vld [vmem:[%s1546 + $0x70] sm:$0xf]
        %v1576 = vld [vmem:[%s1546 + $0x74] sm:$0xf]
        %v1577 = vld [vmem:[%s1546 + $0x78] sm:$0xf]
        %v1578 = vld [vmem:[%s1546 + $0x7c] sm:$0xf]
        %v1611 = vunpack.c.l.b16 %v1547
        %v1612 = vunpack.c.l.b16 %v1548
        %v1613 = vunpack.c.l.b16 %v1549
        %v1614 = vunpack.c.l.b16 %v1550
        %v1615 = vunpack.c.l.b16 %v1551
        %v1616 = vunpack.c.l.b16 %v1552
        %v1617 = vunpack.c.l.b16 %v1553
        %v1618 = vunpack.c.l.b16 %v1554
        %v1619 = vunpack.c.l.b16 %v1555
        %v1620 = vunpack.c.l.b16 %v1556
        %v1621 = vunpack.c.l.b16 %v1557
        %v1622 = vunpack.c.l.b16 %v1558
        %v1623 = vunpack.c.l.b16 %v1559
        %v1624 = vunpack.c.l.b16 %v1560
        %v1625 = vunpack.c.l.b16 %v1561
        %v1626 = vunpack.c.l.b16 %v1562
        %v1627 = vunpack.c.l.b16 %v1563
        %v1628 = vunpack.c.l.b16 %v1564
        %v1629 = vunpack.c.l.b16 %v1565
        %v1630 = vunpack.c.l.b16 %v1566
        %v1631 = vunpack.c.l.b16 %v1567
        %v1632 = vunpack.c.l.b16 %v1568
        %v1633 = vunpack.c.l.b16 %v1569
        %v1634 = vunpack.c.l.b16 %v1570
        %v1635 = vunpack.c.l.b16 %v1571
        %v1636 = vunpack.c.l.b16 %v1572
        %v1637 = vunpack.c.l.b16 %v1573
        %v1638 = vunpack.c.l.b16 %v1574
        %v1639 = vunpack.c.l.b16 %v1575
        %v1640 = vunpack.c.l.b16 %v1576
        %v1641 = vunpack.c.l.b16 %v1577
        %v1642 = vunpack.c.l.b16 %v1578
        %v1643 = vpack.c.b16 %v1612, %v1611
        %v1644 = vpack.c.b16 %v1614, %v1613
        %v1645 = vpack.c.b16 %v1616, %v1615
        %v1646 = vpack.c.b16 %v1618, %v1617
        %v1647 = vpack.c.b16 %v1620, %v1619
        %v1648 = vpack.c.b16 %v1622, %v1621
        %v1649 = vpack.c.b16 %v1624, %v1623
        %v1650 = vpack.c.b16 %v1626, %v1625
        %v1651 = vpack.c.b16 %v1628, %v1627
        %v1652 = vpack.c.b16 %v1630, %v1629
        %v1653 = vpack.c.b16 %v1632, %v1631
        %v1654 = vpack.c.b16 %v1634, %v1633
        %v1655 = vpack.c.b16 %v1636, %v1635
        %v1656 = vpack.c.b16 %v1638, %v1637
        %v1657 = vpack.c.b16 %v1640, %v1639
        %v1658 = vpack.c.b16 %v1642, %v1641
        %1675 = vmatpush.bf16.msra.mxu0 %v1650
        %1676 = vmatpush.bf16.msra.mxu0 %v1649
        %1677 = vmatpush.bf16.msra.mxu0 %v1648
        %1678 = vmatpush.bf16.msra.mxu0 %v1647
        %1679 = vmatpush.bf16.msra.mxu0 %v1646
        %1680 = vmatpush.bf16.msra.mxu0 %v1645
        %1681 = vmatpush.bf16.msra.mxu0 %v1644
        %1682 = vmatpush.bf16.msra.mxu0 %v1643
        %1683 = vmatmul.bf16.gmra.mxu0 %v439
        %v1684 = vpop.f32.mrf.mxu0
        %v1685 = vadd.f32 0.0, %v1684
        %v1686 = vpop.f32.mrf.mxu0
        %v1687 = vadd.f32 0.0, %v1686
        %1688 = vdwg.mxu0
        %1689 = vmatpush.bf16.msra.mxu0 %v1658
        %1690 = vmatpush.bf16.msra.mxu0 %v1657
        %1691 = vmatpush.bf16.msra.mxu0 %v1656
        %1692 = vmatpush.bf16.msra.mxu0 %v1655
        %1693 = vmatpush.bf16.msra.mxu0 %v1654
        %1694 = vmatpush.bf16.msra.mxu0 %v1653
        %1695 = vmatpush.bf16.msra.mxu0 %v1652
        %1696 = vmatpush.bf16.msra.mxu0 %v1651
        %1697 = vmatmul.bf16.gmra.mxu0 %v440
        %v1698 = vpop.f32.mrf.mxu0
        %v1699 = vadd.f32 %v1685, %v1698
        %v1700 = vpop.f32.mrf.mxu0
        %v1701 = vadd.f32 %v1687, %v1700
        %1702 = vdwg.mxu0
        %v1703 = vpack.c.bf16 %v1699, %v1699
        %v1704 = vpack.c.bf16 %v1701, %v1701
        %s1705 = scalar_lea.vmem %s353, 16 [#allocation4]
        %1706 = vst.msk [vmem:[%s1705] sm:$0xf] %vm571, %v1703
        %1707 = vst.msk [vmem:[%s1705 + $0x4] sm:$0xf] %vm571, %v1704
        %s1708 = scalar_lea.vmem %s391, 256
        %v1709 = vld [vmem:[%s1708] sm:$0xf]
        %v1710 = vld [vmem:[%s1708 + $0x4] sm:$0xf]
        %v1711 = vld [vmem:[%s1708 + $0x8] sm:$0xf]
        %v1712 = vld [vmem:[%s1708 + $0xc] sm:$0xf]
        %v1713 = vld [vmem:[%s1708 + $0x10] sm:$0xf]
        %v1714 = vld [vmem:[%s1708 + $0x14] sm:$0xf]
        %v1715 = vld [vmem:[%s1708 + $0x18] sm:$0xf]
        %v1716 = vld [vmem:[%s1708 + $0x1c] sm:$0xf]
        %v1717 = vld [vmem:[%s1708 + $0x20] sm:$0xf]
        %v1718 = vld [vmem:[%s1708 + $0x24] sm:$0xf]
        %v1719 = vld [vmem:[%s1708 + $0x28] sm:$0xf]
        %v1720 = vld [vmem:[%s1708 + $0x2c] sm:$0xf]
        %v1721 = vld [vmem:[%s1708 + $0x30] sm:$0xf]
        %v1722 = vld [vmem:[%s1708 + $0x34] sm:$0xf]
        %v1723 = vld [vmem:[%s1708 + $0x38] sm:$0xf]
        %v1724 = vld [vmem:[%s1708 + $0x3c] sm:$0xf]
        %v1725 = vld [vmem:[%s1708 + $0x40] sm:$0xf]
        %v1726 = vld [vmem:[%s1708 + $0x44] sm:$0xf]
        %v1727 = vld [vmem:[%s1708 + $0x48] sm:$0xf]
        %v1728 = vld [vmem:[%s1708 + $0x4c] sm:$0xf]
        %v1729 = vld [vmem:[%s1708 + $0x50] sm:$0xf]
        %v1730 = vld [vmem:[%s1708 + $0x54] sm:$0xf]
        %v1731 = vld [vmem:[%s1708 + $0x58] sm:$0xf]
        %v1732 = vld [vmem:[%s1708 + $0x5c] sm:$0xf]
        %v1733 = vld [vmem:[%s1708 + $0x60] sm:$0xf]
        %v1734 = vld [vmem:[%s1708 + $0x64] sm:$0xf]
        %v1735 = vld [vmem:[%s1708 + $0x68] sm:$0xf]
        %v1736 = vld [vmem:[%s1708 + $0x6c] sm:$0xf]
        %v1737 = vld [vmem:[%s1708 + $0x70] sm:$0xf]
        %v1738 = vld [vmem:[%s1708 + $0x74] sm:$0xf]
        %v1739 = vld [vmem:[%s1708 + $0x78] sm:$0xf]
        %v1740 = vld [vmem:[%s1708 + $0x7c] sm:$0xf]
        %v1773 = vunpack.c.l.b16 %v1709
        %v1774 = vunpack.c.l.b16 %v1710
        %v1775 = vunpack.c.l.b16 %v1711
        %v1776 = vunpack.c.l.b16 %v1712
        %v1777 = vunpack.c.l.b16 %v1713
        %v1778 = vunpack.c.l.b16 %v1714
        %v1779 = vunpack.c.l.b16 %v1715
        %v1780 = vunpack.c.l.b16 %v1716
        %v1781 = vunpack.c.l.b16 %v1717
        %v1782 = vunpack.c.l.b16 %v1718
        %v1783 = vunpack.c.l.b16 %v1719
        %v1784 = vunpack.c.l.b16 %v1720
        %v1785 = vunpack.c.l.b16 %v1721
        %v1786 = vunpack.c.l.b16 %v1722
        %v1787 = vunpack.c.l.b16 %v1723
        %v1788 = vunpack.c.l.b16 %v1724
        %v1789 = vunpack.c.l.b16 %v1725
        %v1790 = vunpack.c.l.b16 %v1726
        %v1791 = vunpack.c.l.b16 %v1727
        %v1792 = vunpack.c.l.b16 %v1728
        %v1793 = vunpack.c.l.b16 %v1729
        %v1794 = vunpack.c.l.b16 %v1730
        %v1795 = vunpack.c.l.b16 %v1731
        %v1796 = vunpack.c.l.b16 %v1732
        %v1797 = vunpack.c.l.b16 %v1733
        %v1798 = vunpack.c.l.b16 %v1734
        %v1799 = vunpack.c.l.b16 %v1735
        %v1800 = vunpack.c.l.b16 %v1736
        %v1801 = vunpack.c.l.b16 %v1737
        %v1802 = vunpack.c.l.b16 %v1738
        %v1803 = vunpack.c.l.b16 %v1739
        %v1804 = vunpack.c.l.b16 %v1740
        %v1805 = vpack.c.b16 %v1774, %v1773
        %v1806 = vpack.c.b16 %v1776, %v1775
        %v1807 = vpack.c.b16 %v1778, %v1777
        %v1808 = vpack.c.b16 %v1780, %v1779
        %v1809 = vpack.c.b16 %v1782, %v1781
        %v1810 = vpack.c.b16 %v1784, %v1783
        %v1811 = vpack.c.b16 %v1786, %v1785
        %v1812 = vpack.c.b16 %v1788, %v1787
        %v1813 = vpack.c.b16 %v1790, %v1789
        %v1814 = vpack.c.b16 %v1792, %v1791
        %v1815 = vpack.c.b16 %v1794, %v1793
        %v1816 = vpack.c.b16 %v1796, %v1795
        %v1817 = vpack.c.b16 %v1798, %v1797
        %v1818 = vpack.c.b16 %v1800, %v1799
        %v1819 = vpack.c.b16 %v1802, %v1801
        %v1820 = vpack.c.b16 %v1804, %v1803
        %1837 = vmatpush.bf16.msra.mxu0 %v1812
        %1838 = vmatpush.bf16.msra.mxu0 %v1811
        %1839 = vmatpush.bf16.msra.mxu0 %v1810
        %1840 = vmatpush.bf16.msra.mxu0 %v1809
        %1841 = vmatpush.bf16.msra.mxu0 %v1808
        %1842 = vmatpush.bf16.msra.mxu0 %v1807
        %1843 = vmatpush.bf16.msra.mxu0 %v1806
        %1844 = vmatpush.bf16.msra.mxu0 %v1805
        %1845 = vmatmul.bf16.gmra.mxu0 %v439
        %v1846 = vpop.f32.mrf.mxu0
        %v1847 = vadd.f32 0.0, %v1846
        %v1848 = vpop.f32.mrf.mxu0
        %v1849 = vadd.f32 0.0, %v1848
        %1850 = vdwg.mxu0
        %1851 = vmatpush.bf16.msra.mxu0 %v1820
        %1852 = vmatpush.bf16.msra.mxu0 %v1819
        %1853 = vmatpush.bf16.msra.mxu0 %v1818
        %1854 = vmatpush.bf16.msra.mxu0 %v1817
        %1855 = vmatpush.bf16.msra.mxu0 %v1816
        %1856 = vmatpush.bf16.msra.mxu0 %v1815
        %1857 = vmatpush.bf16.msra.mxu0 %v1814
        %1858 = vmatpush.bf16.msra.mxu0 %v1813
        %1859 = vmatmul.bf16.gmra.mxu0 %v440
        %v1860 = vpop.f32.mrf.mxu0
        %v1861 = vadd.f32 %v1847, %v1860
        %v1862 = vpop.f32.mrf.mxu0
        %v1863 = vadd.f32 %v1849, %v1862
        %1864 = vdwg.mxu0
        %v1865 = vpack.c.bf16 %v1861, %v1861
        %v1866 = vpack.c.bf16 %v1863, %v1863
        %s1867 = scalar_lea.vmem %s360, 16 [#allocation6]
        %1868 = vst.msk [vmem:[%s1867] sm:$0xf] %vm571, %v1865
        %1869 = vst.msk [vmem:[%s1867 + $0x4] sm:$0xf] %vm571, %v1866
        %s1870 = scalar_lea.vmem %s377, 384
        %v1871 = vld [vmem:[%s1870] sm:$0xf]
        %v1872 = vld [vmem:[%s1870 + $0x4] sm:$0xf]
        %v1873 = vld [vmem:[%s1870 + $0x8] sm:$0xf]
        %v1874 = vld [vmem:[%s1870 + $0xc] sm:$0xf]
        %v1875 = vld [vmem:[%s1870 + $0x10] sm:$0xf]
        %v1876 = vld [vmem:[%s1870 + $0x14] sm:$0xf]
        %v1877 = vld [vmem:[%s1870 + $0x18] sm:$0xf]
        %v1878 = vld [vmem:[%s1870 + $0x1c] sm:$0xf]
        %v1879 = vld [vmem:[%s1870 + $0x20] sm:$0xf]
        %v1880 = vld [vmem:[%s1870 + $0x24] sm:$0xf]
        %v1881 = vld [vmem:[%s1870 + $0x28] sm:$0xf]
        %v1882 = vld [vmem:[%s1870 + $0x2c] sm:$0xf]
        %v1883 = vld [vmem:[%s1870 + $0x30] sm:$0xf]
        %v1884 = vld [vmem:[%s1870 + $0x34] sm:$0xf]
        %v1885 = vld [vmem:[%s1870 + $0x38] sm:$0xf]
        %v1886 = vld [vmem:[%s1870 + $0x3c] sm:$0xf]
        %v1887 = vld [vmem:[%s1870 + $0x40] sm:$0xf]
        %v1888 = vld [vmem:[%s1870 + $0x44] sm:$0xf]
        %v1889 = vld [vmem:[%s1870 + $0x48] sm:$0xf]
        %v1890 = vld [vmem:[%s1870 + $0x4c] sm:$0xf]
        %v1891 = vld [vmem:[%s1870 + $0x50] sm:$0xf]
        %v1892 = vld [vmem:[%s1870 + $0x54] sm:$0xf]
        %v1893 = vld [vmem:[%s1870 + $0x58] sm:$0xf]
        %v1894 = vld [vmem:[%s1870 + $0x5c] sm:$0xf]
        %v1895 = vld [vmem:[%s1870 + $0x60] sm:$0xf]
        %v1896 = vld [vmem:[%s1870 + $0x64] sm:$0xf]
        %v1897 = vld [vmem:[%s1870 + $0x68] sm:$0xf]
        %v1898 = vld [vmem:[%s1870 + $0x6c] sm:$0xf]
        %v1899 = vld [vmem:[%s1870 + $0x70] sm:$0xf]
        %v1900 = vld [vmem:[%s1870 + $0x74] sm:$0xf]
        %v1901 = vld [vmem:[%s1870 + $0x78] sm:$0xf]
        %v1902 = vld [vmem:[%s1870 + $0x7c] sm:$0xf]
        %v1935 = vunpack.c.l.b16 %v1871
        %v1936 = vunpack.c.l.b16 %v1872
        %v1937 = vunpack.c.l.b16 %v1873
        %v1938 = vunpack.c.l.b16 %v1874
        %v1939 = vunpack.c.l.b16 %v1875
        %v1940 = vunpack.c.l.b16 %v1876
        %v1941 = vunpack.c.l.b16 %v1877
        %v1942 = vunpack.c.l.b16 %v1878
        %v1943 = vunpack.c.l.b16 %v1879
        %v1944 = vunpack.c.l.b16 %v1880
        %v1945 = vunpack.c.l.b16 %v1881
        %v1946 = vunpack.c.l.b16 %v1882
        %v1947 = vunpack.c.l.b16 %v1883
        %v1948 = vunpack.c.l.b16 %v1884
        %v1949 = vunpack.c.l.b16 %v1885
        %v1950 = vunpack.c.l.b16 %v1886
        %v1951 = vunpack.c.l.b16 %v1887
        %v1952 = vunpack.c.l.b16 %v1888
        %v1953 = vunpack.c.l.b16 %v1889
        %v1954 = vunpack.c.l.b16 %v1890
        %v1955 = vunpack.c.l.b16 %v1891
        %v1956 = vunpack.c.l.b16 %v1892
        %v1957 = vunpack.c.l.b16 %v1893
        %v1958 = vunpack.c.l.b16 %v1894
        %v1959 = vunpack.c.l.b16 %v1895
        %v1960 = vunpack.c.l.b16 %v1896
        %v1961 = vunpack.c.l.b16 %v1897
        %v1962 = vunpack.c.l.b16 %v1898
        %v1963 = vunpack.c.l.b16 %v1899
        %v1964 = vunpack.c.l.b16 %v1900
        %v1965 = vunpack.c.l.b16 %v1901
        %v1966 = vunpack.c.l.b16 %v1902
        %v1967 = vpack.c.b16 %v1936, %v1935
        %v1968 = vpack.c.b16 %v1938, %v1937
        %v1969 = vpack.c.b16 %v1940, %v1939
        %v1970 = vpack.c.b16 %v1942, %v1941
        %v1971 = vpack.c.b16 %v1944, %v1943
        %v1972 = vpack.c.b16 %v1946, %v1945
        %v1973 = vpack.c.b16 %v1948, %v1947
        %v1974 = vpack.c.b16 %v1950, %v1949
        %v1975 = vpack.c.b16 %v1952, %v1951
        %v1976 = vpack.c.b16 %v1954, %v1953
        %v1977 = vpack.c.b16 %v1956, %v1955
        %v1978 = vpack.c.b16 %v1958, %v1957
        %v1979 = vpack.c.b16 %v1960, %v1959
        %v1980 = vpack.c.b16 %v1962, %v1961
        %v1981 = vpack.c.b16 %v1964, %v1963
        %v1982 = vpack.c.b16 %v1966, %v1965
        %1999 = vmatpush.bf16.msra.mxu0 %v1974
        %2000 = vmatpush.bf16.msra.mxu0 %v1973
        %2001 = vmatpush.bf16.msra.mxu0 %v1972
        %2002 = vmatpush.bf16.msra.mxu0 %v1971
        %2003 = vmatpush.bf16.msra.mxu0 %v1970
        %2004 = vmatpush.bf16.msra.mxu0 %v1969
        %2005 = vmatpush.bf16.msra.mxu0 %v1968
        %2006 = vmatpush.bf16.msra.mxu0 %v1967
        %2007 = vmatmul.bf16.gmra.mxu0 %v439
        %v2008 = vpop.f32.mrf.mxu0
        %v2009 = vadd.f32 0.0, %v2008
        %v2010 = vpop.f32.mrf.mxu0
        %v2011 = vadd.f32 0.0, %v2010
        %2012 = vdwg.mxu0
        %2013 = vmatpush.bf16.msra.mxu0 %v1982
        %2014 = vmatpush.bf16.msra.mxu0 %v1981
        %2015 = vmatpush.bf16.msra.mxu0 %v1980
        %2016 = vmatpush.bf16.msra.mxu0 %v1979
        %2017 = vmatpush.bf16.msra.mxu0 %v1978
        %2018 = vmatpush.bf16.msra.mxu0 %v1977
        %2019 = vmatpush.bf16.msra.mxu0 %v1976
        %2020 = vmatpush.bf16.msra.mxu0 %v1975
        %2021 = vmatmul.bf16.gmra.mxu0 %v440
        %v2022 = vpop.f32.mrf.mxu0
        %v2023 = vadd.f32 %v2009, %v2022
        %v2024 = vpop.f32.mrf.mxu0
        %v2025 = vadd.f32 %v2011, %v2024
        %2026 = vdwg.mxu0
        %v2027 = vmul.f32 %v2023, 0.17677669
        %v2028 = vmul.f32 %v2025, 0.17677669
        %v2029 = vpack.c.bf16 %v2027, %v2027
        %v2030 = vpack.c.bf16 %v2028, %v2028
        %s2031 = scalar_lea.vmem %s346, 24 [#allocation2]
        %2032 = vst.msk [vmem:[%s2031] sm:$0xf] %vm571, %v2029
        %2033 = vst.msk [vmem:[%s2031 + $0x4] sm:$0xf] %vm571, %v2030
        %s2034 = scalar_lea.vmem %s384, 384
        %v2035 = vld [vmem:[%s2034] sm:$0xf]
        %v2036 = vld [vmem:[%s2034 + $0x4] sm:$0xf]
        %v2037 = vld [vmem:[%s2034 + $0x8] sm:$0xf]
        %v2038 = vld [vmem:[%s2034 + $0xc] sm:$0xf]
        %v2039 = vld [vmem:[%s2034 + $0x10] sm:$0xf]
        %v2040 = vld [vmem:[%s2034 + $0x14] sm:$0xf]
        %v2041 = vld [vmem:[%s2034 + $0x18] sm:$0xf]
        %v2042 = vld [vmem:[%s2034 + $0x1c] sm:$0xf]
        %v2043 = vld [vmem:[%s2034 + $0x20] sm:$0xf]
        %v2044 = vld [vmem:[%s2034 + $0x24] sm:$0xf]
        %v2045 = vld [vmem:[%s2034 + $0x28] sm:$0xf]
        %v2046 = vld [vmem:[%s2034 + $0x2c] sm:$0xf]
        %v2047 = vld [vmem:[%s2034 + $0x30] sm:$0xf]
        %v2048 = vld [vmem:[%s2034 + $0x34] sm:$0xf]
        %v2049 = vld [vmem:[%s2034 + $0x38] sm:$0xf]
        %v2050 = vld [vmem:[%s2034 + $0x3c] sm:$0xf]
        %v2051 = vld [vmem:[%s2034 + $0x40] sm:$0xf]
        %v2052 = vld [vmem:[%s2034 + $0x44] sm:$0xf]
        %v2053 = vld [vmem:[%s2034 + $0x48] sm:$0xf]
        %v2054 = vld [vmem:[%s2034 + $0x4c] sm:$0xf]
        %v2055 = vld [vmem:[%s2034 + $0x50] sm:$0xf]
        %v2056 = vld [vmem:[%s2034 + $0x54] sm:$0xf]
        %v2057 = vld [vmem:[%s2034 + $0x58] sm:$0xf]
        %v2058 = vld [vmem:[%s2034 + $0x5c] sm:$0xf]
        %v2059 = vld [vmem:[%s2034 + $0x60] sm:$0xf]
        %v2060 = vld [vmem:[%s2034 + $0x64] sm:$0xf]
        %v2061 = vld [vmem:[%s2034 + $0x68] sm:$0xf]
        %v2062 = vld [vmem:[%s2034 + $0x6c] sm:$0xf]
        %v2063 = vld [vmem:[%s2034 + $0x70] sm:$0xf]
        %v2064 = vld [vmem:[%s2034 + $0x74] sm:$0xf]
        %v2065 = vld [vmem:[%s2034 + $0x78] sm:$0xf]
        %v2066 = vld [vmem:[%s2034 + $0x7c] sm:$0xf]
        %v2099 = vunpack.c.l.b16 %v2035
        %v2100 = vunpack.c.l.b16 %v2036
        %v2101 = vunpack.c.l.b16 %v2037
        %v2102 = vunpack.c.l.b16 %v2038
        %v2103 = vunpack.c.l.b16 %v2039
        %v2104 = vunpack.c.l.b16 %v2040
        %v2105 = vunpack.c.l.b16 %v2041
        %v2106 = vunpack.c.l.b16 %v2042
        %v2107 = vunpack.c.l.b16 %v2043
        %v2108 = vunpack.c.l.b16 %v2044
        %v2109 = vunpack.c.l.b16 %v2045
        %v2110 = vunpack.c.l.b16 %v2046
        %v2111 = vunpack.c.l.b16 %v2047
        %v2112 = vunpack.c.l.b16 %v2048
        %v2113 = vunpack.c.l.b16 %v2049
        %v2114 = vunpack.c.l.b16 %v2050
        %v2115 = vunpack.c.l.b16 %v2051
        %v2116 = vunpack.c.l.b16 %v2052
        %v2117 = vunpack.c.l.b16 %v2053
        %v2118 = vunpack.c.l.b16 %v2054
        %v2119 = vunpack.c.l.b16 %v2055
        %v2120 = vunpack.c.l.b16 %v2056
        %v2121 = vunpack.c.l.b16 %v2057
        %v2122 = vunpack.c.l.b16 %v2058
        %v2123 = vunpack.c.l.b16 %v2059
        %v2124 = vunpack.c.l.b16 %v2060
        %v2125 = vunpack.c.l.b16 %v2061
        %v2126 = vunpack.c.l.b16 %v2062
        %v2127 = vunpack.c.l.b16 %v2063
        %v2128 = vunpack.c.l.b16 %v2064
        %v2129 = vunpack.c.l.b16 %v2065
        %v2130 = vunpack.c.l.b16 %v2066
        %v2131 = vpack.c.b16 %v2100, %v2099
        %v2132 = vpack.c.b16 %v2102, %v2101
        %v2133 = vpack.c.b16 %v2104, %v2103
        %v2134 = vpack.c.b16 %v2106, %v2105
        %v2135 = vpack.c.b16 %v2108, %v2107
        %v2136 = vpack.c.b16 %v2110, %v2109
        %v2137 = vpack.c.b16 %v2112, %v2111
        %v2138 = vpack.c.b16 %v2114, %v2113
        %v2139 = vpack.c.b16 %v2116, %v2115
        %v2140 = vpack.c.b16 %v2118, %v2117
        %v2141 = vpack.c.b16 %v2120, %v2119
        %v2142 = vpack.c.b16 %v2122, %v2121
        %v2143 = vpack.c.b16 %v2124, %v2123
        %v2144 = vpack.c.b16 %v2126, %v2125
        %v2145 = vpack.c.b16 %v2128, %v2127
        %v2146 = vpack.c.b16 %v2130, %v2129
        %2163 = vmatpush.bf16.msra.mxu0 %v2138
        %2164 = vmatpush.bf16.msra.mxu0 %v2137
        %2165 = vmatpush.bf16.msra.mxu0 %v2136
        %2166 = vmatpush.bf16.msra.mxu0 %v2135
        %2167 = vmatpush.bf16.msra.mxu0 %v2134
        %2168 = vmatpush.bf16.msra.mxu0 %v2133
        %2169 = vmatpush.bf16.msra.mxu0 %v2132
        %2170 = vmatpush.bf16.msra.mxu0 %v2131
        %2171 = vmatmul.bf16.gmra.mxu0 %v439
        %v2172 = vpop.f32.mrf.mxu0
        %v2173 = vadd.f32 0.0, %v2172
        %v2174 = vpop.f32.mrf.mxu0
        %v2175 = vadd.f32 0.0, %v2174
        %2176 = vdwg.mxu0
        %2177 = vmatpush.bf16.msra.mxu0 %v2146
        %2178 = vmatpush.bf16.msra.mxu0 %v2145
        %2179 = vmatpush.bf16.msra.mxu0 %v2144
        %2180 = vmatpush.bf16.msra.mxu0 %v2143
        %2181 = vmatpush.bf16.msra.mxu0 %v2142
        %2182 = vmatpush.bf16.msra.mxu0 %v2141
        %2183 = vmatpush.bf16.msra.mxu0 %v2140
        %2184 = vmatpush.bf16.msra.mxu0 %v2139
        %2185 = vmatmul.bf16.gmra.mxu0 %v440
        %v2186 = vpop.f32.mrf.mxu0
        %v2187 = vadd.f32 %v2173, %v2186
        %v2188 = vpop.f32.mrf.mxu0
        %v2189 = vadd.f32 %v2175, %v2188
        %2190 = vdwg.mxu0
        %v2191 = vpack.c.bf16 %v2187, %v2187
        %v2192 = vpack.c.bf16 %v2189, %v2189
        %s2193 = scalar_lea.vmem %s353, 24 [#allocation4]
        %2194 = vst.msk [vmem:[%s2193] sm:$0xf] %vm571, %v2191
        %2195 = vst.msk [vmem:[%s2193 + $0x4] sm:$0xf] %vm571, %v2192
        %s2196 = scalar_lea.vmem %s391, 384
        %v2197 = vld [vmem:[%s2196] sm:$0xf]
        %v2198 = vld [vmem:[%s2196 + $0x4] sm:$0xf]
        %v2199 = vld [vmem:[%s2196 + $0x8] sm:$0xf]
        %v2200 = vld [vmem:[%s2196 + $0xc] sm:$0xf]
        %v2201 = vld [vmem:[%s2196 + $0x10] sm:$0xf]
        %v2202 = vld [vmem:[%s2196 + $0x14] sm:$0xf]
        %v2203 = vld [vmem:[%s2196 + $0x18] sm:$0xf]
        %v2204 = vld [vmem:[%s2196 + $0x1c] sm:$0xf]
        %v2205 = vld [vmem:[%s2196 + $0x20] sm:$0xf]
        %v2206 = vld [vmem:[%s2196 + $0x24] sm:$0xf]
        %v2207 = vld [vmem:[%s2196 + $0x28] sm:$0xf]
        %v2208 = vld [vmem:[%s2196 + $0x2c] sm:$0xf]
        %v2209 = vld [vmem:[%s2196 + $0x30] sm:$0xf]
        %v2210 = vld [vmem:[%s2196 + $0x34] sm:$0xf]
        %v2211 = vld [vmem:[%s2196 + $0x38] sm:$0xf]
        %v2212 = vld [vmem:[%s2196 + $0x3c] sm:$0xf]
        %v2213 = vld [vmem:[%s2196 + $0x40] sm:$0xf]
        %v2214 = vld [vmem:[%s2196 + $0x44] sm:$0xf]
        %v2215 = vld [vmem:[%s2196 + $0x48] sm:$0xf]
        %v2216 = vld [vmem:[%s2196 + $0x4c] sm:$0xf]
        %v2217 = vld [vmem:[%s2196 + $0x50] sm:$0xf]
        %v2218 = vld [vmem:[%s2196 + $0x54] sm:$0xf]
        %v2219 = vld [vmem:[%s2196 + $0x58] sm:$0xf]
        %v2220 = vld [vmem:[%s2196 + $0x5c] sm:$0xf]
        %v2221 = vld [vmem:[%s2196 + $0x60] sm:$0xf]
        %v2222 = vld [vmem:[%s2196 + $0x64] sm:$0xf]
        %v2223 = vld [vmem:[%s2196 + $0x68] sm:$0xf]
        %v2224 = vld [vmem:[%s2196 + $0x6c] sm:$0xf]
        %v2225 = vld [vmem:[%s2196 + $0x70] sm:$0xf]
        %v2226 = vld [vmem:[%s2196 + $0x74] sm:$0xf]
        %v2227 = vld [vmem:[%s2196 + $0x78] sm:$0xf]
        %v2228 = vld [vmem:[%s2196 + $0x7c] sm:$0xf]
        %v2261 = vunpack.c.l.b16 %v2197
        %v2262 = vunpack.c.l.b16 %v2198
        %v2263 = vunpack.c.l.b16 %v2199
        %v2264 = vunpack.c.l.b16 %v2200
        %v2265 = vunpack.c.l.b16 %v2201
        %v2266 = vunpack.c.l.b16 %v2202
        %v2267 = vunpack.c.l.b16 %v2203
        %v2268 = vunpack.c.l.b16 %v2204
        %v2269 = vunpack.c.l.b16 %v2205
        %v2270 = vunpack.c.l.b16 %v2206
        %v2271 = vunpack.c.l.b16 %v2207
        %v2272 = vunpack.c.l.b16 %v2208
        %v2273 = vunpack.c.l.b16 %v2209
        %v2274 = vunpack.c.l.b16 %v2210
        %v2275 = vunpack.c.l.b16 %v2211
        %v2276 = vunpack.c.l.b16 %v2212
        %v2277 = vunpack.c.l.b16 %v2213
        %v2278 = vunpack.c.l.b16 %v2214
        %v2279 = vunpack.c.l.b16 %v2215
        %v2280 = vunpack.c.l.b16 %v2216
        %v2281 = vunpack.c.l.b16 %v2217
        %v2282 = vunpack.c.l.b16 %v2218
        %v2283 = vunpack.c.l.b16 %v2219
        %v2284 = vunpack.c.l.b16 %v2220
        %v2285 = vunpack.c.l.b16 %v2221
        %v2286 = vunpack.c.l.b16 %v2222
        %v2287 = vunpack.c.l.b16 %v2223
        %v2288 = vunpack.c.l.b16 %v2224
        %v2289 = vunpack.c.l.b16 %v2225
        %v2290 = vunpack.c.l.b16 %v2226
        %v2291 = vunpack.c.l.b16 %v2227
        %v2292 = vunpack.c.l.b16 %v2228
        %v2293 = vpack.c.b16 %v2262, %v2261
        %v2294 = vpack.c.b16 %v2264, %v2263
        %v2295 = vpack.c.b16 %v2266, %v2265
        %v2296 = vpack.c.b16 %v2268, %v2267
        %v2297 = vpack.c.b16 %v2270, %v2269
        %v2298 = vpack.c.b16 %v2272, %v2271
        %v2299 = vpack.c.b16 %v2274, %v2273
        %v2300 = vpack.c.b16 %v2276, %v2275
        %v2301 = vpack.c.b16 %v2278, %v2277
        %v2302 = vpack.c.b16 %v2280, %v2279
        %v2303 = vpack.c.b16 %v2282, %v2281
        %v2304 = vpack.c.b16 %v2284, %v2283
        %v2305 = vpack.c.b16 %v2286, %v2285
        %v2306 = vpack.c.b16 %v2288, %v2287
        %v2307 = vpack.c.b16 %v2290, %v2289
        %v2308 = vpack.c.b16 %v2292, %v2291
        %2325 = vmatpush.bf16.msra.mxu0 %v2300
        %2326 = vmatpush.bf16.msra.mxu0 %v2299
        %2327 = vmatpush.bf16.msra.mxu0 %v2298
        %2328 = vmatpush.bf16.msra.mxu0 %v2297
        %2329 = vmatpush.bf16.msra.mxu0 %v2296
        %2330 = vmatpush.bf16.msra.mxu0 %v2295
        %2331 = vmatpush.bf16.msra.mxu0 %v2294
        %2332 = vmatpush.bf16.msra.mxu0 %v2293
        %2333 = vmatmul.bf16.gmra.mxu0 %v439
        %v2334 = vpop.f32.mrf.mxu0
        %v2335 = vadd.f32 0.0, %v2334
        %v2336 = vpop.f32.mrf.mxu0
        %v2337 = vadd.f32 0.0, %v2336
        %2338 = vdwg.mxu0
        %2339 = vmatpush.bf16.msra.mxu0 %v2308
        %2340 = vmatpush.bf16.msra.mxu0 %v2307
        %2341 = vmatpush.bf16.msra.mxu0 %v2306
        %2342 = vmatpush.bf16.msra.mxu0 %v2305
        %2343 = vmatpush.bf16.msra.mxu0 %v2304
        %2344 = vmatpush.bf16.msra.mxu0 %v2303
        %2345 = vmatpush.bf16.msra.mxu0 %v2302
        %2346 = vmatpush.bf16.msra.mxu0 %v2301
        %2347 = vmatmul.bf16.gmra.mxu0 %v440
        %v2348 = vpop.f32.mrf.mxu0
        %v2349 = vadd.f32 %v2335, %v2348
        %v2350 = vpop.f32.mrf.mxu0
        %v2351 = vadd.f32 %v2337, %v2350
        %2352 = vdwg.mxu0
        %v2353 = vpack.c.bf16 %v2349, %v2349
        %v2354 = vpack.c.bf16 %v2351, %v2351
        %s2355 = scalar_lea.vmem %s360, 24 [#allocation6]
        %2356 = vst.msk [vmem:[%s2355] sm:$0xf] %vm571, %v2353
        %2357 = vst.msk [vmem:[%s2355 + $0x4] sm:$0xf] %vm571, %v2354
        %s2358 = sand.u32 %s161, 1
        %s2359 = scalar_lea.sflag [#allocation3], %s2358
        %s2360 = sand.u32 %s161, 1
        %s2361 = smul.addr %s2360, 32
        %s2362 = scalar_lea.vmem [#allocation2], %s2361
        %s2363 = sand.u32 %s24, 1
        %s2364 = scalar_lea.sflag [#allocation5], %s2363
        %s2365 = sand.u32 %s191, 1
        %s2366 = smul.addr %s2365, 32
        %s2367 = scalar_lea.vmem [#allocation4], %s2366
        %s2368 = sand.u32 %s24, 1
        %s2369 = scalar_lea.sflag [#allocation5], %s2368
        %s2370 = sand.u32 %s221, 1
        %s2371 = smul.addr %s2370, 32
        %s2372 = scalar_lea.vmem [#allocation6], %s2371
        // Predicated region
        $region37: #{tpu_custom_call.1} parent=35 // pred_check
          %p2373 = pneg %p171
        $region38: #{tpu_custom_call.1} parent=35 // pred_check_branch
          %2375 = sbr.rel (%p2373) target = $region40
        $region39: #{tpu_custom_call.1} parent=35 // pred_region
          #allocation8 [shape = 'u32[6]{0}', space=smem, size = 0x18, scoped, tag = 'DMA stride descriptor']
          %s2376 = smul.u32 4, %s31
          %s2377 = smul.u32 2, %s30
          %2379 = vsyncadd %s2359, 0
          %s2380 = smul.addr %s2376, 4
          %s2381 = sadd.s32 %s2377, %s2380
          %s2382 = smul.addr %s29, 32
          %s2383 = sadd.s32 %s2381, %s2382
          %s2384 = smul.addr %s2383, 4
          %s2385 = scalar_lea.hbm %s4, %s2384
          %s2387 = sshll.u32 1, 14
          %s2388 = sxor.u32 4294967295, %s2387
          %s2391 = sshll.u32 7, 18
          %s2392 = sxor.u32 4294967295, %s2391
          %s2393 = sand.u32 0, %s2392
          %s2395 = sor.u32 %s2393, 0
          %s2396 = sshll.u32 %s2362, 4
          %s2397 = int_to_ptr.vmem [resolvable:$true] %s2396
          %s2398 = sshll.u32 %s2385, 4
          %s2399 = int_to_ptr.hbm [resolvable:$true] %s2398
          %2405 = sst [smem:[#allocation8]] 128
          %s2406 = scalar_lea.smem [#allocation8], 1
          %2407 = sst [smem:[%s2406]] 256
          %s2408 = scalar_lea.smem [#allocation8], 2
          %2409 = sst [smem:[%s2408]] 2
          %s2410 = scalar_lea.smem [#allocation8], 3
          %2411 = sst [smem:[%s2410]] 64
          %s2412 = scalar_lea.smem [#allocation8], 4
          %2413 = sst [smem:[%s2412]] 64
          %s2414 = scalar_lea.smem [#allocation8], 5
          %2415 = sst [smem:[%s2414]] 4
          %2417 = dma.general %s2397, 512, %s2399, %s2359, [#allocation7], [#allocation8], %s2395, 0
        $region40: #{tpu_custom_call.1} parent=35 // pred_fallthru
          _
        // Predicated region
        $region41: #{tpu_custom_call.1} parent=35 // pred_check
          %p2418 = pneg %p201
        $region42: #{tpu_custom_call.1} parent=35 // pred_check_branch
          %2420 = sbr.rel (%p2418) target = $region44
        $region43: #{tpu_custom_call.1} parent=35 // pred_region
          #allocation10 [shape = 'u32[6]{0}', space=smem, size = 0x18, scoped, tag = 'DMA stride descriptor']
          %s2421 = smul.u32 4, %s31
          %s2422 = smul.u32 2, %s30
          %2424 = vsyncadd %s2364, 0
          %s2425 = smul.addr %s2421, 4
          %s2426 = sadd.s32 %s2422, %s2425
          %s2427 = smul.addr %s29, 32
          %s2428 = sadd.s32 %s2426, %s2427
          %s2429 = smul.addr %s2428, 4
          %s2430 = scalar_lea.hbm %s5, %s2429
          %s2432 = sshll.u32 1, 14
          %s2433 = sxor.u32 4294967295, %s2432
          %s2436 = sshll.u32 7, 18
          %s2437 = sxor.u32 4294967295, %s2436
          %s2438 = sand.u32 0, %s2437
          %s2440 = sor.u32 %s2438, 0
          %s2441 = sshll.u32 %s2367, 4
          %s2442 = int_to_ptr.vmem [resolvable:$true] %s2441
          %s2443 = sshll.u32 %s2430, 4
          %s2444 = int_to_ptr.hbm [resolvable:$true] %s2443
          %2450 = sst [smem:[#allocation10]] 128
          %s2451 = scalar_lea.smem [#allocation10], 1
          %2452 = sst [smem:[%s2451]] 256
          %s2453 = scalar_lea.smem [#allocation10], 2
          %2454 = sst [smem:[%s2453]] 2
          %s2455 = scalar_lea.smem [#allocation10], 3
          %2456 = sst [smem:[%s2455]] 64
          %s2457 = scalar_lea.smem [#allocation10], 4
          %2458 = sst [smem:[%s2457]] 64
          %s2459 = scalar_lea.smem [#allocation10], 5
          %2460 = sst [smem:[%s2459]] 4
          %2462 = dma.general %s2442, 512, %s2444, %s2364, [#allocation9], [#allocation10], %s2440, 0
        $region44: #{tpu_custom_call.1} parent=35 // pred_fallthru
          _
        // Predicated region
        $region45: #{tpu_custom_call.1} parent=35 // pred_check
          %p2463 = pneg %p231
        $region46: #{tpu_custom_call.1} parent=35 // pred_check_branch
          %2465 = sbr.rel (%p2463) target = $region48
        $region47: #{tpu_custom_call.1} parent=35 // pred_region
          #allocation12 [shape = 'u32[6]{0}', space=smem, size = 0x18, scoped, tag = 'DMA stride descriptor']
          %s2466 = smul.u32 4, %s31
          %s2467 = smul.u32 2, %s30
          %2469 = vsyncadd %s2369, 0
          %s2470 = smul.addr %s2466, 4
          %s2471 = sadd.s32 %s2467, %s2470
          %s2472 = smul.addr %s29, 32
          %s2473 = sadd.s32 %s2471, %s2472
          %s2474 = smul.addr %s2473, 4
          %s2475 = scalar_lea.hbm %s6, %s2474
          %s2477 = sshll.u32 1, 14
          %s2478 = sxor.u32 4294967295, %s2477
          %s2481 = sshll.u32 7, 18
          %s2482 = sxor.u32 4294967295, %s2481
          %s2483 = sand.u32 0, %s2482
          %s2485 = sor.u32 %s2483, 0
          %s2486 = sshll.u32 %s2372, 4
          %s2487 = int_to_ptr.vmem [resolvable:$true] %s2486
          %s2488 = sshll.u32 %s2475, 4
          %s2489 = int_to_ptr.hbm [resolvable:$true] %s2488
          %2495 = sst [smem:[#allocation12]] 128
          %s2496 = scalar_lea.smem [#allocation12], 1
          %2497 = sst [smem:[%s2496]] 256
          %s2498 = scalar_lea.smem [#allocation12], 2
          %2499 = sst [smem:[%s2498]] 2
          %s2500 = scalar_lea.smem [#allocation12], 3
          %2501 = sst [smem:[%s2500]] 64
          %s2502 = scalar_lea.smem [#allocation12], 4
          %2503 = sst [smem:[%s2502]] 64
          %s2504 = scalar_lea.smem [#allocation12], 5
          %2505 = sst [smem:[%s2504]] 4
          %2507 = dma.general %s2487, 512, %s2489, %s2369, [#allocation11], [#allocation12], %s2485, 0
        $region48: #{tpu_custom_call.1} parent=35 // pred_fallthru
          _
      $region36: #{tpu_custom_call.1} parent=5 // pred_fallthru
        _
      %p2508 = scmp.le.s32.totalorder 2, %s19
      // Predicated region
      $region49: #{tpu_custom_call.1} parent=5 // pred_check
        %p2509 = pneg %p2508
      $region50: #{tpu_custom_call.1} parent=5 // pred_check_branch
        %2511 = sbr.rel (%p2509) target = $region52
      $region51: #{tpu_custom_call.1} parent=5 // pred_region
        %s2512 = ssub.s32 %s19, 2
        // Predicated region
        $region53: #{tpu_custom_call.1} parent=51 // pred_check
          %p2513 = pneg %p177
        $region54: #{tpu_custom_call.1} parent=51 // pred_check_branch
          %2515 = sbr.rel (%p2513) target = $region56
        $region55: #{tpu_custom_call.1} parent=51 // pred_region
          %s2516 = sand.u32 %s162, 1
          %s2517 = scalar_lea.sflag [#allocation3], %s2516
          %s2518 = sand.u32 %s162, 1
          %s2519 = smul.addr %s2518, 32
          %s2520 = scalar_lea.vmem [#allocation2], %s2519
          %2522 = dma.done %s2517, 512
        $region56: #{tpu_custom_call.1} parent=51 // pred_fallthru
          _
        // Predicated region
        $region57: #{tpu_custom_call.1} parent=51 // pred_check
          %p2523 = pneg %p207
        $region58: #{tpu_custom_call.1} parent=51 // pred_check_branch
          %2525 = sbr.rel (%p2523) target = $region60
        $region59: #{tpu_custom_call.1} parent=51 // pred_region
          %s2526 = sand.u32 %s25, 1
          %s2527 = scalar_lea.sflag [#allocation5], %s2526
          %s2528 = sand.u32 %s192, 1
          %s2529 = smul.addr %s2528, 32
          %s2530 = scalar_lea.vmem [#allocation4], %s2529
          %2532 = dma.done %s2527, 512
        $region60: #{tpu_custom_call.1} parent=51 // pred_fallthru
          _
        // Predicated region
        $region61: #{tpu_custom_call.1} parent=51 // pred_check
          %p2533 = pneg %p237
        $region62: #{tpu_custom_call.1} parent=51 // pred_check_branch
          %2535 = sbr.rel (%p2533) target = $region64
        $region63: #{tpu_custom_call.1} parent=51 // pred_region
          %s2536 = sand.u32 %s25, 1
          %s2537 = scalar_lea.sflag [#allocation5], %s2536
          %s2538 = sand.u32 %s222, 1
          %s2539 = smul.addr %s2538, 32
          %s2540 = scalar_lea.vmem [#allocation6], %s2539
          %2542 = dma.done %s2537, 512
        $region64: #{tpu_custom_call.1} parent=51 // pred_fallthru
          _
      $region52: #{tpu_custom_call.1} parent=5 // pred_fallthru
        _
    $region6: #{tpu_custom_call.1} parent=1 // loop_footer
      %s23 = sadd.s32 1, %s19
    $region7: #{tpu_custom_call.1} parent=1 // loop_footer_branch
      %18 = sbr.rel target = $region3
    $region8: #{tpu_custom_call.1} parent=1 // loop_exit
      _
    %2543 = vsyncpa [#allocation3], 1
    %s2544 = scalar_lea.sflag [#allocation3], 1
    %2545 = vsyncpa %s2544, 1
    %2546 = vsyncpa [#allocation5], 1
    %s2547 = scalar_lea.sflag [#allocation5], 1
    %2548 = vsyncpa %s2547, 1

</llo_original>
